<compile_context>
chip_gen: v5e
topology: v5e:2x2
jax: 0.10.0
libtpu: 0.0.40
codegen_flags: <defaults>
</compile_context>

<pallas_src>
import jax
import jax.numpy as jnp
from jax.experimental import pallas as pl
from jax.experimental.pallas import tpu as pltpu

LANE = 128


def _round_up(n, m):
    return (n + m - 1) // m * m


def mlp_kernel(x_ref,
               w1_ref, b1_ref,
               w2_ref, b2_ref,
               w3_ref, b3_ref,
               w4_ref, b4_ref,
               w5_ref, b5_ref,
               o_ref):
    """Whole 5-layer MLP fused in a single kernel invocation per batch tile.

    Weights (and x) arrive in the compute dtype (bf16 or f32); biases are f32.
    All dots accumulate in f32 on the MXU; bias add / ReLU run on the VPU in
    f32 (free filler under the MXU slot).
    """
    cdt = w1_ref.dtype  # compute dtype for MXU operands

    h = jnp.dot(x_ref[...], w1_ref[...],
                preferred_element_type=jnp.float32) + b1_ref[...]
    h = jnp.maximum(h, 0.0)                      # relu(fc1); dropout1(p=0) = id

    h = jnp.dot(h.astype(cdt), w2_ref[...],
                preferred_element_type=jnp.float32) + b2_ref[...]
    h = jnp.maximum(h, 0.0)                      # relu(fc2); dropout2(p=0) = id

    h = jnp.dot(h.astype(cdt), w3_ref[...],
                preferred_element_type=jnp.float32) + b3_ref[...]
    h = jnp.maximum(h, 0.0)                      # relu(fc3)

    h = jnp.dot(h.astype(cdt), w4_ref[...],
                preferred_element_type=jnp.float32) + b4_ref[...]
    h = jnp.maximum(h, 0.0)                      # relu(fc4)

    h = jnp.dot(h.astype(cdt), w5_ref[...],
                preferred_element_type=jnp.float32) + b5_ref[...]
    o_ref[...] = h.astype(o_ref.dtype)           # fc5, no activation


def prepare_params(params, input_dim, *, compute_dtype=jnp.bfloat16):
    """One-time pad + cast of weights/biases (call once, outside the hot path).

    params: list of 5 (W, b) with W: (in, out) (already transposed vs. torch)
    and b: (1, out) or (out,).  Every layer's N (output features) is zero-
    padded to a multiple of 128 (lane-dense, unmasked stores, fully-used MXU
    columns); the first layer's K stays at input_dim (x is not K-padded).
    Zero-padding is exact: padded weight rows/cols and bias entries are 0 and
    ReLU(0)=0 propagates zeros through the chain.
    """
    prepared = []
    k = input_dim
    for (w, b) in params:
        n = w.shape[1]
        n_pad = _round_up(n, LANE)
        wp = jnp.zeros((k, n_pad), compute_dtype)
        wp = wp.at[:w.shape[0], :n].set(w.astype(compute_dtype))
        bp = jnp.zeros((1, n_pad), jnp.float32)
        bp = bp.at[:, :n].set(jnp.reshape(b, (1, -1)).astype(jnp.float32))
        prepared.append((wp, bp))
        k = n_pad
    return prepared


def regressor_forward(x, prepared_params, *, grid_steps=1, core_parallel=False,
                      out_dtype=jnp.bfloat16):
    """Run the fused MLP on already-prepared (padded/cast) params.

    Returns the PADDED output of shape (B_pad, round_up(out_dim, 128)); the
    caller slices [:B, :out_dim] when the logical result is needed (the slice
    fuses into downstream ops, avoiding an extra HBM copy here).

    grid_steps=1 (default) is right for single-TensorCore chips (v5e/v6e).
    On v7x use grid_steps=2, core_parallel=True to put one batch tile on each
    TensorCore.
    """
    B, in_dim = x.shape
    compute_dtype = prepared_params[0][0].dtype
    x = x.astype(compute_dtype)          # no-op if caller already cast

    steps = max(1, int(grid_steps))
    if steps > 1:
        b_pad = _round_up(B, steps * 8)
        if b_pad != B:
            xb = jnp.zeros((b_pad, in_dim), compute_dtype)
            x = xb.at[:B, :].set(x)
    else:
        b_pad = B                        # no batch padding in the default path
    tile = b_pad // steps

    flat_args = [x]
    in_specs = [pl.BlockSpec((tile, in_dim), lambda i: (i, 0))]
    for (wp, bp) in prepared_params:
        flat_args += [wp, bp]
        in_specs += [
            pl.BlockSpec(wp.shape, lambda i: (0, 0)),   # resident weight
            pl.BlockSpec(bp.shape, lambda i: (0, 0)),   # resident bias
        ]

    n_out_pad = prepared_params[-1][0].shape[1]
    out_spec = pl.BlockSpec((tile, n_out_pad), lambda i: (i, 0))

    if steps == 1:
        semantics = ("arbitrary",)                       # single step: no sharding
    elif core_parallel:
        semantics = (pltpu.CORE_PARALLEL,)               # v7x: 1 tile / TensorCore
    else:
        semantics = ("parallel",)

    # Advisory cost estimate for the XLA scheduler (padded dims = actual MXU work).
    flops = 2 * b_pad * sum(w.shape[0] * w.shape[1] for w, _ in prepared_params)
    bytes_accessed = int(sum(a.size * a.dtype.itemsize for a in flat_args)
                         + b_pad * n_out_pad * jnp.dtype(out_dtype).itemsize)

    out = pl.pallas_call(
        mlp_kernel,
        out_shape=jax.ShapeDtypeStruct((b_pad, n_out_pad), out_dtype),
        grid_spec=pl.GridSpec(
            grid=(steps,),
            in_specs=in_specs,
            out_specs=out_spec,
        ),
        compiler_params=pltpu.CompilerParams(dimension_semantics=semantics),
        cost_estimate=pl.CostEstimate(
            flops=int(flops), transcendentals=0, bytes_accessed=bytes_accessed),
    )(*flat_args)

    return out


def init_params(key, dims):
    """Deterministic synthetic parameters. dims = [in, h1, h2, h3, h4, out]."""
    params = []
    for i in range(len(dims) - 1):
        key, kw, kb = jax.random.split(key, 3)
        w = (jax.random.normal(kw, (dims[i], dims[i + 1]), jnp.float32)
             * (1.0 / jnp.sqrt(dims[i])))
        b = jax.random.normal(kb, (1, dims[i + 1]), jnp.float32) * 0.01
        params.append((w, b))
    return params


def regressor_ref(x, params, compute_dtype=jnp.float32):
    """Plain-JAX reference of the same forward pass (same cast pattern)."""
    h = x
    for i, (w, b) in enumerate(params):
        h = jnp.dot(h.astype(compute_dtype), w.astype(compute_dtype),
                    preferred_element_type=jnp.float32) + b.reshape(1, -1)
        if i < len(params) - 1:
            h = jnp.maximum(h, 0.0)
    return h


if __name__ == "__main__":
    # Module dims: input_dim, hidden_dim1..4, output_dim (hidden_dim5 unused).
    input_dim, h1, h2, h3, h4, output_dim = 32, 64, 64, 32, 32, 8
    batch = 512                      # already tile-divisible -> no batch pad

    key = jax.random.PRNGKey(0)
    key, kx = jax.random.split(key)
    x = jax.random.normal(kx, (batch, input_dim), jnp.float32)
    params = init_params(key, [input_dim, h1, h2, h3, h4, output_dim])

    # ---- bf16-operand / f32-accumulation path (default, MXU-friendly) ----
    prepared_bf16 = prepare_params(params, input_dim,
                                   compute_dtype=jnp.bfloat16)   # one-time cost
    out_p = regressor_forward(x, prepared_bf16,
                              grid_steps=1, out_dtype=jnp.bfloat16)
    out_p = jax.block_until_ready(out_p)
    out_bf16 = out_p[:batch, :output_dim].astype(jnp.float32)    # caller-side slice
    ref_bf16 = regressor_ref(x, params, compute_dtype=jnp.bfloat16)
    assert out_bf16.shape == (batch, output_dim)
    scale = float(jnp.max(jnp.abs(ref_bf16))) + 1e-6
    assert float(jnp.max(jnp.abs(out_bf16 - ref_bf16))) / scale < 3e-2

    # ---- fp32-operand path: exact-semantics check vs. plain-JAX reference ----
    prepared_f32 = prepare_params(params, input_dim, compute_dtype=jnp.float32)
    out_f32 = regressor_forward(x, prepared_f32,
                                grid_steps=1, out_dtype=jnp.float32)
    out_f32 = jax.block_until_ready(out_f32)[:batch, :output_dim]
    ref_f32 = regressor_ref(x, params, compute_dtype=jnp.float32)
    assert jnp.allclose(out_f32, ref_f32, atol=1e-4, rtol=1e-4)

    print("KERNEL_OK")
</pallas_src>

<mosaic_0001>
module attributes {stable_mosaic.version = 11 : i64} {
  func.func @mlp_kernel(%arg0: i32, %arg1: memref<512x32xbf16, #tpu.memory_space<vmem>>, %arg2: memref<32x128xbf16, #tpu.memory_space<vmem>>, %arg3: memref<1x128xf32, #tpu.memory_space<vmem>>, %arg4: memref<128x128xbf16, #tpu.memory_space<vmem>>, %arg5: memref<1x128xf32, #tpu.memory_space<vmem>>, %arg6: memref<128x128xbf16, #tpu.memory_space<vmem>>, %arg7: memref<1x128xf32, #tpu.memory_space<vmem>>, %arg8: memref<128x128xbf16, #tpu.memory_space<vmem>>, %arg9: memref<1x128xf32, #tpu.memory_space<vmem>>, %arg10: memref<128x128xbf16, #tpu.memory_space<vmem>>, %arg11: memref<1x128xf32, #tpu.memory_space<vmem>>, %arg12: memref<512x128xbf16, #tpu.memory_space<vmem>>) attributes {dimension_semantics = [#tpu.dimension_semantics<arbitrary>], iteration_bounds = array<i64: 1>, scalar_prefetch = 0 : i64, scratch_operands = 0 : i64, tpu.core_type = #tpu.core_type<tc>, window_params = [{transform_indices = @transform_0, window_bounds = array<i64: 512, 32>}, {pipeline_mode = #tpu.pipeline_mode<synchronous>, transform_indices = @transform_1, window_bounds = array<i64: 32, 128>}, {pipeline_mode = #tpu.pipeline_mode<synchronous>, transform_indices = @transform_2, window_bounds = array<i64: 1, 128>}, {pipeline_mode = #tpu.pipeline_mode<synchronous>, transform_indices = @transform_3, window_bounds = array<i64: 128, 128>}, {pipeline_mode = #tpu.pipeline_mode<synchronous>, transform_indices = @transform_4, window_bounds = array<i64: 1, 128>}, {pipeline_mode = #tpu.pipeline_mode<synchronous>, transform_indices = @transform_5, window_bounds = array<i64: 128, 128>}, {pipeline_mode = #tpu.pipeline_mode<synchronous>, transform_indices = @transform_6, window_bounds = array<i64: 1, 128>}, {pipeline_mode = #tpu.pipeline_mode<synchronous>, transform_indices = @transform_7, window_bounds = array<i64: 128, 128>}, {pipeline_mode = #tpu.pipeline_mode<synchronous>, transform_indices = @transform_8, window_bounds = array<i64: 1, 128>}, {pipeline_mode = #tpu.pipeline_mode<synchronous>, transform_indices = @transform_9, window_bounds = array<i64: 128, 128>}, {pipeline_mode = #tpu.pipeline_mode<synchronous>, transform_indices = @transform_10, window_bounds = array<i64: 1, 128>}, {transform_indices = @transform_11, window_bounds = array<i64: 512, 128>}]} {
    %c0 = arith.constant 0 : index
    %c0_0 = arith.constant 0 : index
    %0 = vector.load %arg1[%c0, %c0_0] : memref<512x32xbf16, #tpu.memory_space<vmem>>, vector<512x32xbf16>
    %c0_1 = arith.constant 0 : index
    %c0_2 = arith.constant 0 : index
    %1 = vector.load %arg2[%c0_1, %c0_2] : memref<32x128xbf16, #tpu.memory_space<vmem>>, vector<32x128xbf16>
    %cst = arith.constant dense<0.000000e+00> : vector<512x128xf32>
    %2 = tpu.matmul %0, %1, %cst {dimension_numbers = #tpu.dot_dimension_numbers<[1], [0], [0], [1], [0, 0, 1, 1], [], []>} : vector<512x32xbf16>, vector<32x128xbf16>, vector<512x128xf32> -> vector<512x128xf32>
    %c0_3 = arith.constant 0 : index
    %c0_4 = arith.constant 0 : index
    %3 = vector.load %arg3[%c0_3, %c0_4] : memref<1x128xf32, #tpu.memory_space<vmem>>, vector<1x128xf32>
    %4 = vector.broadcast %3 : vector<1x128xf32> to vector<512x128xf32>
    %5 = arith.addf %2, %4 : vector<512x128xf32>
    %cst_5 = arith.constant 0.000000e+00 : f32
    %6 = vector.broadcast %cst_5 : f32 to vector<512x128xf32>
    %7 = arith.maximumf %5, %6 : vector<512x128xf32>
    %8 = arith.truncf %7 : vector<512x128xf32> to vector<512x128xbf16>
    %c0_6 = arith.constant 0 : index
    %c0_7 = arith.constant 0 : index
    %9 = vector.load %arg4[%c0_6, %c0_7] : memref<128x128xbf16, #tpu.memory_space<vmem>>, vector<128x128xbf16>
    %cst_8 = arith.constant dense<0.000000e+00> : vector<512x128xf32>
    %10 = tpu.matmul %8, %9, %cst_8 {dimension_numbers = #tpu.dot_dimension_numbers<[1], [0], [0], [1], [0, 0, 1, 1], [], []>} : vector<512x128xbf16>, vector<128x128xbf16>, vector<512x128xf32> -> vector<512x128xf32>
    %c0_9 = arith.constant 0 : index
    %c0_10 = arith.constant 0 : index
    %11 = vector.load %arg5[%c0_9, %c0_10] : memref<1x128xf32, #tpu.memory_space<vmem>>, vector<1x128xf32>
    %12 = vector.broadcast %11 : vector<1x128xf32> to vector<512x128xf32>
    %13 = arith.addf %10, %12 : vector<512x128xf32>
    %cst_11 = arith.constant 0.000000e+00 : f32
    %14 = vector.broadcast %cst_11 : f32 to vector<512x128xf32>
    %15 = arith.maximumf %13, %14 : vector<512x128xf32>
    %16 = arith.truncf %15 : vector<512x128xf32> to vector<512x128xbf16>
    %c0_12 = arith.constant 0 : index
    %c0_13 = arith.constant 0 : index
    %17 = vector.load %arg6[%c0_12, %c0_13] : memref<128x128xbf16, #tpu.memory_space<vmem>>, vector<128x128xbf16>
    %cst_14 = arith.constant dense<0.000000e+00> : vector<512x128xf32>
    %18 = tpu.matmul %16, %17, %cst_14 {dimension_numbers = #tpu.dot_dimension_numbers<[1], [0], [0], [1], [0, 0, 1, 1], [], []>} : vector<512x128xbf16>, vector<128x128xbf16>, vector<512x128xf32> -> vector<512x128xf32>
    %c0_15 = arith.constant 0 : index
    %c0_16 = arith.constant 0 : index
    %19 = vector.load %arg7[%c0_15, %c0_16] : memref<1x128xf32, #tpu.memory_space<vmem>>, vector<1x128xf32>
    %20 = vector.broadcast %19 : vector<1x128xf32> to vector<512x128xf32>
    %21 = arith.addf %18, %20 : vector<512x128xf32>
    %cst_17 = arith.constant 0.000000e+00 : f32
    %22 = vector.broadcast %cst_17 : f32 to vector<512x128xf32>
    %23 = arith.maximumf %21, %22 : vector<512x128xf32>
    %24 = arith.truncf %23 : vector<512x128xf32> to vector<512x128xbf16>
    %c0_18 = arith.constant 0 : index
    %c0_19 = arith.constant 0 : index
    %25 = vector.load %arg8[%c0_18, %c0_19] : memref<128x128xbf16, #tpu.memory_space<vmem>>, vector<128x128xbf16>
    %cst_20 = arith.constant dense<0.000000e+00> : vector<512x128xf32>
    %26 = tpu.matmul %24, %25, %cst_20 {dimension_numbers = #tpu.dot_dimension_numbers<[1], [0], [0], [1], [0, 0, 1, 1], [], []>} : vector<512x128xbf16>, vector<128x128xbf16>, vector<512x128xf32> -> vector<512x128xf32>
    %c0_21 = arith.constant 0 : index
    %c0_22 = arith.constant 0 : index
    %27 = vector.load %arg9[%c0_21, %c0_22] : memref<1x128xf32, #tpu.memory_space<vmem>>, vector<1x128xf32>
    %28 = vector.broadcast %27 : vector<1x128xf32> to vector<512x128xf32>
    %29 = arith.addf %26, %28 : vector<512x128xf32>
    %cst_23 = arith.constant 0.000000e+00 : f32
    %30 = vector.broadcast %cst_23 : f32 to vector<512x128xf32>
    %31 = arith.maximumf %29, %30 : vector<512x128xf32>
    %32 = arith.truncf %31 : vector<512x128xf32> to vector<512x128xbf16>
    %c0_24 = arith.constant 0 : index
    %c0_25 = arith.constant 0 : index
    %33 = vector.load %arg10[%c0_24, %c0_25] : memref<128x128xbf16, #tpu.memory_space<vmem>>, vector<128x128xbf16>
    %cst_26 = arith.constant dense<0.000000e+00> : vector<512x128xf32>
    %34 = tpu.matmul %32, %33, %cst_26 {dimension_numbers = #tpu.dot_dimension_numbers<[1], [0], [0], [1], [0, 0, 1, 1], [], []>} : vector<512x128xbf16>, vector<128x128xbf16>, vector<512x128xf32> -> vector<512x128xf32>
    %c0_27 = arith.constant 0 : index
    %c0_28 = arith.constant 0 : index
    %35 = vector.load %arg11[%c0_27, %c0_28] : memref<1x128xf32, #tpu.memory_space<vmem>>, vector<1x128xf32>
    %36 = vector.broadcast %35 : vector<1x128xf32> to vector<512x128xf32>
    %37 = arith.addf %34, %36 : vector<512x128xf32>
    %38 = arith.truncf %37 : vector<512x128xf32> to vector<512x128xbf16>
    %c0_29 = arith.constant 0 : index
    %c0_30 = arith.constant 0 : index
    %39 = vector.load %arg12[%c0_29, %c0_30] : memref<512x128xbf16, #tpu.memory_space<vmem>>, vector<512x128xbf16>
    tpu.vector_store %arg12[%c0_29, %c0_30], %38 {strides = array<i32>} : memref<512x128xbf16, #tpu.memory_space<vmem>>, vector<512x128xbf16>,
    return
  }
  func.func @transform_0(%arg0: i32) -> (i32, i32) {
    %c0_i32 = arith.constant 0 : i32
    %c0_i32_0 = arith.constant 0 : i32
    return %arg0, %c0_i32 : i32, i32
  }
  func.func @transform_1(%arg0: i32) -> (i32, i32) {
    %c0_i32 = arith.constant 0 : i32
    %c0_i32_0 = arith.constant 0 : i32
    %c0_i32_1 = arith.constant 0 : i32
    return %c0_i32, %c0_i32_0 : i32, i32
  }
  func.func @transform_2(%arg0: i32) -> (i32, i32) {
    %c0_i32 = arith.constant 0 : i32
    %c0_i32_0 = arith.constant 0 : i32
    %c0_i32_1 = arith.constant 0 : i32
    return %c0_i32, %c0_i32_0 : i32, i32
  }
  func.func @transform_3(%arg0: i32) -> (i32, i32) {
    %c0_i32 = arith.constant 0 : i32
    %c0_i32_0 = arith.constant 0 : i32
    %c0_i32_1 = arith.constant 0 : i32
    return %c0_i32, %c0_i32_0 : i32, i32
  }
  func.func @transform_4(%arg0: i32) -> (i32, i32) {
    %c0_i32 = arith.constant 0 : i32
    %c0_i32_0 = arith.constant 0 : i32
    %c0_i32_1 = arith.constant 0 : i32
    return %c0_i32, %c0_i32_0 : i32, i32
  }
  func.func @transform_5(%arg0: i32) -> (i32, i32) {
    %c0_i32 = arith.constant 0 : i32
    %c0_i32_0 = arith.constant 0 : i32
    %c0_i32_1 = arith.constant 0 : i32
    return %c0_i32, %c0_i32_0 : i32, i32
  }
  func.func @transform_6(%arg0: i32) -> (i32, i32) {
    %c0_i32 = arith.constant 0 : i32
    %c0_i32_0 = arith.constant 0 : i32
    %c0_i32_1 = arith.constant 0 : i32
    return %c0_i32, %c0_i32_0 : i32, i32
  }
  func.func @transform_7(%arg0: i32) -> (i32, i32) {
    %c0_i32 = arith.constant 0 : i32
    %c0_i32_0 = arith.constant 0 : i32
    %c0_i32_1 = arith.constant 0 : i32
    return %c0_i32, %c0_i32_0 : i32, i32
  }
  func.func @transform_8(%arg0: i32) -> (i32, i32) {
    %c0_i32 = arith.constant 0 : i32
    %c0_i32_0 = arith.constant 0 : i32
    %c0_i32_1 = arith.constant 0 : i32
    return %c0_i32, %c0_i32_0 : i32, i32
  }
  func.func @transform_9(%arg0: i32) -> (i32, i32) {
    %c0_i32 = arith.constant 0 : i32
    %c0_i32_0 = arith.constant 0 : i32
    %c0_i32_1 = arith.constant 0 : i32
    return %c0_i32, %c0_i32_0 : i32, i32
  }
  func.func @transform_10(%arg0: i32) -> (i32, i32) {
    %c0_i32 = arith.constant 0 : i32
    %c0_i32_0 = arith.constant 0 : i32
    %c0_i32_1 = arith.constant 0 : i32
    return %c0_i32, %c0_i32_0 : i32, i32
  }
  func.func @transform_11(%arg0: i32) -> (i32, i32) {
    %c0_i32 = arith.constant 0 : i32
    %c0_i32_0 = arith.constant 0 : i32
    return %arg0, %c0_i32 : i32, i32
  }
}

</mosaic_0001>

<llo_original>
// kernel: tpu_custom_call.1
$region0: #{tpu_custom_call.1}
  #allocation0 [shape = 'u32[]', space=smem, size = 0x4, offset = 0x4, fixed_abs, tag = 'smem constant byte address 0x4 - core index']
  #allocation1 [shape = 'u32[72,128]{1,0:T(1,128)}', space=vmem, size = 0x9000, scoped, tag = 'internal scratch']
  %s0 = inlined_call_operand.vmem [shape: bf16[512,32], index: 0, kind: input, shape index: {}]
  %s1 = inlined_call_operand.vmem [shape: bf16[32,128], index: 1, kind: input, shape index: {}]
  %s2 = inlined_call_operand.vmem [shape: f32[1,128], index: 2, kind: input, shape index: {}]
  %s3 = inlined_call_operand.vmem [shape: bf16[128,128], index: 3, kind: input, shape index: {}]
  %s4 = inlined_call_operand.vmem [shape: f32[1,128], index: 4, kind: input, shape index: {}]
  %s5 = inlined_call_operand.vmem [shape: bf16[128,128], index: 5, kind: input, shape index: {}]
  %s6 = inlined_call_operand.vmem [shape: f32[1,128], index: 6, kind: input, shape index: {}]
  %s7 = inlined_call_operand.vmem [shape: bf16[128,128], index: 7, kind: input, shape index: {}]
  %s8 = inlined_call_operand.vmem [shape: f32[1,128], index: 8, kind: input, shape index: {}]
  %s9 = inlined_call_operand.vmem [shape: bf16[128,128], index: 9, kind: input, shape index: {}]
  %s10 = inlined_call_operand.vmem [shape: f32[1,128], index: 10, kind: input, shape index: {}]
  %s11 = inlined_call_operand.hbm [shape: bf16[512,128], index: 11, kind: output, shape index: {}]
  %s12 = sld [smem:[#allocation0]]
  $region54: #{tpu_custom_call.1} parent=0
    _
  %s14 = ssub.s32 1, %s12
  %s15 = scalar_select 0, %s14, %s12
  $region1: #{tpu_custom_call.1} parent=0
    #allocation2 [shape = 'u8[131072]{0}', space=vmem, size = 0x20000, scoped, tag = 'output window, operand 0, single buffered']
    #allocation3 [shape = 's32[1]{0}', space=sflag, size = 0x4, scoped, tag = 'scoped memory for tpu_custom_call.1']
    %16 = vsyncpa [#allocation3], 0
    // Predicated region
    $region2: #{tpu_custom_call.1} parent=1 // pred_check
      _
    $region3: #{tpu_custom_call.1} parent=1 // pred_check_branch
      %18 = sbr.rel (0) target = $region5
    $region4: #{tpu_custom_call.1} parent=1 // pred_region
      _
    $region5: #{tpu_custom_call.1} parent=1 // pred_fallthru
      _
    // Predicated region
    $region6: #{tpu_custom_call.1} parent=1 // pred_check
      _
    $region7: #{tpu_custom_call.1} parent=1 // pred_check_branch
      %20 = sbr.rel (0) target = $region9
    $region8: #{tpu_custom_call.1} parent=1 // pred_region
      _
    $region9: #{tpu_custom_call.1} parent=1 // pred_fallthru
      _
    // Predicated region
    $region10: #{tpu_custom_call.1} parent=1 // pred_check
      _
    $region11: #{tpu_custom_call.1} parent=1 // pred_check_branch
      %22 = sbr.rel (0) target = $region13
    $region12: #{tpu_custom_call.1} parent=1 // pred_region
      _
    $region13: #{tpu_custom_call.1} parent=1 // pred_fallthru
      _
    // Predicated region
    $region14: #{tpu_custom_call.1} parent=1 // pred_check
      _
    $region15: #{tpu_custom_call.1} parent=1 // pred_check_branch
      %24 = sbr.rel (0) target = $region17
    $region16: #{tpu_custom_call.1} parent=1 // pred_region
      _
    $region17: #{tpu_custom_call.1} parent=1 // pred_fallthru
      _
    // Predicated region
    $region18: #{tpu_custom_call.1} parent=1 // pred_check
      _
    $region19: #{tpu_custom_call.1} parent=1 // pred_check_branch
      %26 = sbr.rel (0) target = $region21
    $region20: #{tpu_custom_call.1} parent=1 // pred_region
      _
    $region21: #{tpu_custom_call.1} parent=1 // pred_fallthru
      _
    // Predicated region
    $region22: #{tpu_custom_call.1} parent=1 // pred_check
      _
    $region23: #{tpu_custom_call.1} parent=1 // pred_check_branch
      %28 = sbr.rel (0) target = $region25
    $region24: #{tpu_custom_call.1} parent=1 // pred_region
      _
    $region25: #{tpu_custom_call.1} parent=1 // pred_fallthru
      _
    // Predicated region
    $region26: #{tpu_custom_call.1} parent=1 // pred_check
      _
    $region27: #{tpu_custom_call.1} parent=1 // pred_check_branch
      %30 = sbr.rel (0) target = $region29
    $region28: #{tpu_custom_call.1} parent=1 // pred_region
      _
    $region29: #{tpu_custom_call.1} parent=1 // pred_fallthru
      _
    // Predicated region
    $region30: #{tpu_custom_call.1} parent=1 // pred_check
      _
    $region31: #{tpu_custom_call.1} parent=1 // pred_check_branch
      %32 = sbr.rel (0) target = $region33
    $region32: #{tpu_custom_call.1} parent=1 // pred_region
      _
    $region33: #{tpu_custom_call.1} parent=1 // pred_fallthru
      _
    // Predicated region
    $region34: #{tpu_custom_call.1} parent=1 // pred_check
      _
    $region35: #{tpu_custom_call.1} parent=1 // pred_check_branch
      %34 = sbr.rel (0) target = $region37
    $region36: #{tpu_custom_call.1} parent=1 // pred_region
      _
    $region37: #{tpu_custom_call.1} parent=1 // pred_fallthru
      _
    // Predicated region
    $region38: #{tpu_custom_call.1} parent=1 // pred_check
      _
    $region39: #{tpu_custom_call.1} parent=1 // pred_check_branch
      %36 = sbr.rel (0) target = $region41
    $region40: #{tpu_custom_call.1} parent=1 // pred_region
      _
    $region41: #{tpu_custom_call.1} parent=1 // pred_fallthru
      _
    // Predicated region
    $region42: #{tpu_custom_call.1} parent=1 // pred_check
      _
    $region43: #{tpu_custom_call.1} parent=1 // pred_check_branch
      %38 = sbr.rel (0) target = $region45
    $region44: #{tpu_custom_call.1} parent=1 // pred_region
      _
    $region45: #{tpu_custom_call.1} parent=1 // pred_fallthru
      _
    %v40 = vld [vmem:[%s0] sm:$0xf]
    %v41 = vld [vmem:[%s0 + $0x4] sm:$0xf]
    %v42 = vld [vmem:[%s0 + $0x8] sm:$0xf]
    %v43 = vld [vmem:[%s0 + $0xc] sm:$0xf]
    %v44 = vld [vmem:[%s0 + $0x10] sm:$0xf]
    %v45 = vld [vmem:[%s0 + $0x14] sm:$0xf]
    %v46 = vld [vmem:[%s0 + $0x18] sm:$0xf]
    %v47 = vld [vmem:[%s0 + $0x1c] sm:$0xf]
    %v48 = vld [vmem:[%s0 + $0x20] sm:$0xf]
    %v49 = vld [vmem:[%s0 + $0x24] sm:$0xf]
    %v50 = vld [vmem:[%s0 + $0x28] sm:$0xf]
    %v51 = vld [vmem:[%s0 + $0x2c] sm:$0xf]
    %v52 = vld [vmem:[%s0 + $0x30] sm:$0xf]
    %v53 = vld [vmem:[%s0 + $0x34] sm:$0xf]
    %v54 = vld [vmem:[%s0 + $0x38] sm:$0xf]
    %v55 = vld [vmem:[%s0 + $0x3c] sm:$0xf]
    %v56 = vld [vmem:[%s0 + $0x40] sm:$0xf]
    %v57 = vld [vmem:[%s0 + $0x44] sm:$0xf]
    %v58 = vld [vmem:[%s0 + $0x48] sm:$0xf]
    %v59 = vld [vmem:[%s0 + $0x4c] sm:$0xf]
    %v60 = vld [vmem:[%s0 + $0x50] sm:$0xf]
    %v61 = vld [vmem:[%s0 + $0x54] sm:$0xf]
    %v62 = vld [vmem:[%s0 + $0x58] sm:$0xf]
    %v63 = vld [vmem:[%s0 + $0x5c] sm:$0xf]
    %v64 = vld [vmem:[%s0 + $0x60] sm:$0xf]
    %v65 = vld [vmem:[%s0 + $0x64] sm:$0xf]
    %v66 = vld [vmem:[%s0 + $0x68] sm:$0xf]
    %v67 = vld [vmem:[%s0 + $0x6c] sm:$0xf]
    %v68 = vld [vmem:[%s0 + $0x70] sm:$0xf]
    %v69 = vld [vmem:[%s0 + $0x74] sm:$0xf]
    %v70 = vld [vmem:[%s0 + $0x78] sm:$0xf]
    %v71 = vld [vmem:[%s0 + $0x7c] sm:$0xf]
    %v72 = vld [vmem:[%s0 + $0x80] sm:$0xf]
    %v73 = vld [vmem:[%s0 + $0x84] sm:$0xf]
    %v74 = vld [vmem:[%s0 + $0x88] sm:$0xf]
    %v75 = vld [vmem:[%s0 + $0x8c] sm:$0xf]
    %v76 = vld [vmem:[%s0 + $0x90] sm:$0xf]
    %v77 = vld [vmem:[%s0 + $0x94] sm:$0xf]
    %v78 = vld [vmem:[%s0 + $0x98] sm:$0xf]
    %v79 = vld [vmem:[%s0 + $0x9c] sm:$0xf]
    %v80 = vld [vmem:[%s0 + $0xa0] sm:$0xf]
    %v81 = vld [vmem:[%s0 + $0xa4] sm:$0xf]
    %v82 = vld [vmem:[%s0 + $0xa8] sm:$0xf]
    %v83 = vld [vmem:[%s0 + $0xac] sm:$0xf]
    %v84 = vld [vmem:[%s0 + $0xb0] sm:$0xf]
    %v85 = vld [vmem:[%s0 + $0xb4] sm:$0xf]
    %v86 = vld [vmem:[%s0 + $0xb8] sm:$0xf]
    %v87 = vld [vmem:[%s0 + $0xbc] sm:$0xf]
    %v88 = vld [vmem:[%s0 + $0xc0] sm:$0xf]
    %v89 = vld [vmem:[%s0 + $0xc4] sm:$0xf]
    %v90 = vld [vmem:[%s0 + $0xc8] sm:$0xf]
    %v91 = vld [vmem:[%s0 + $0xcc] sm:$0xf]
    %v92 = vld [vmem:[%s0 + $0xd0] sm:$0xf]
    %v93 = vld [vmem:[%s0 + $0xd4] sm:$0xf]
    %v94 = vld [vmem:[%s0 + $0xd8] sm:$0xf]
    %v95 = vld [vmem:[%s0 + $0xdc] sm:$0xf]
    %v96 = vld [vmem:[%s0 + $0xe0] sm:$0xf]
    %v97 = vld [vmem:[%s0 + $0xe4] sm:$0xf]
    %v98 = vld [vmem:[%s0 + $0xe8] sm:$0xf]
    %v99 = vld [vmem:[%s0 + $0xec] sm:$0xf]
    %v100 = vld [vmem:[%s0 + $0xf0] sm:$0xf]
    %v101 = vld [vmem:[%s0 + $0xf4] sm:$0xf]
    %v102 = vld [vmem:[%s0 + $0xf8] sm:$0xf]
    %v103 = vld [vmem:[%s0 + $0xfc] sm:$0xf]
    %v104 = vld [vmem:[%s1] sm:$0xf]
    %v105 = vld [vmem:[%s1 + $0x4] sm:$0xf]
    %v106 = vld [vmem:[%s1 + $0x8] sm:$0xf]
    %v107 = vld [vmem:[%s1 + $0xc] sm:$0xf]
    %v108 = vld [vmem:[%s2] sm:$0x1]
    %v110 = vperm.slane %v108, 0
    %v176 = vunpack.c.l.b16 %v40
    %v177 = vunpack.c.l.b16 %v41
    %v178 = vunpack.c.l.b16 %v42
    %v179 = vunpack.c.l.b16 %v43
    %v180 = vunpack.c.l.b16 %v44
    %v181 = vunpack.c.l.b16 %v45
    %v182 = vunpack.c.l.b16 %v46
    %v183 = vunpack.c.l.b16 %v47
    %v184 = vunpack.c.l.b16 %v48
    %v185 = vunpack.c.l.b16 %v49
    %v186 = vunpack.c.l.b16 %v50
    %v187 = vunpack.c.l.b16 %v51
    %v188 = vunpack.c.l.b16 %v52
    %v189 = vunpack.c.l.b16 %v53
    %v190 = vunpack.c.l.b16 %v54
    %v191 = vunpack.c.l.b16 %v55
    %v192 = vunpack.c.l.b16 %v56
    %v193 = vunpack.c.l.b16 %v57
    %v194 = vunpack.c.l.b16 %v58
    %v195 = vunpack.c.l.b16 %v59
    %v196 = vunpack.c.l.b16 %v60
    %v197 = vunpack.c.l.b16 %v61
    %v198 = vunpack.c.l.b16 %v62
    %v199 = vunpack.c.l.b16 %v63
    %v200 = vunpack.c.l.b16 %v64
    %v201 = vunpack.c.l.b16 %v65
    %v202 = vunpack.c.l.b16 %v66
    %v203 = vunpack.c.l.b16 %v67
    %v204 = vunpack.c.l.b16 %v68
    %v205 = vunpack.c.l.b16 %v69
    %v206 = vunpack.c.l.b16 %v70
    %v207 = vunpack.c.l.b16 %v71
    %v208 = vunpack.c.l.b16 %v72
    %v209 = vunpack.c.l.b16 %v73
    %v210 = vunpack.c.l.b16 %v74
    %v211 = vunpack.c.l.b16 %v75
    %v212 = vunpack.c.l.b16 %v76
    %v213 = vunpack.c.l.b16 %v77
    %v214 = vunpack.c.l.b16 %v78
    %v215 = vunpack.c.l.b16 %v79
    %v216 = vunpack.c.l.b16 %v80
    %v217 = vunpack.c.l.b16 %v81
    %v218 = vunpack.c.l.b16 %v82
    %v219 = vunpack.c.l.b16 %v83
    %v220 = vunpack.c.l.b16 %v84
    %v221 = vunpack.c.l.b16 %v85
    %v222 = vunpack.c.l.b16 %v86
    %v223 = vunpack.c.l.b16 %v87
    %v224 = vunpack.c.l.b16 %v88
    %v225 = vunpack.c.l.b16 %v89
    %v226 = vunpack.c.l.b16 %v90
    %v227 = vunpack.c.l.b16 %v91
    %v228 = vunpack.c.l.b16 %v92
    %v229 = vunpack.c.l.b16 %v93
    %v230 = vunpack.c.l.b16 %v94
    %v231 = vunpack.c.l.b16 %v95
    %v232 = vunpack.c.l.b16 %v96
    %v233 = vunpack.c.l.b16 %v97
    %v234 = vunpack.c.l.b16 %v98
    %v235 = vunpack.c.l.b16 %v99
    %v236 = vunpack.c.l.b16 %v100
    %v237 = vunpack.c.l.b16 %v101
    %v238 = vunpack.c.l.b16 %v102
    %v239 = vunpack.c.l.b16 %v103
    %v240 = vpack.c.b16 %v177, %v176
    %v241 = vpack.c.b16 %v179, %v178
    %v242 = vpack.c.b16 %v181, %v180
    %v243 = vpack.c.b16 %v183, %v182
    %v244 = vpack.c.b16 %v185, %v184
    %v245 = vpack.c.b16 %v187, %v186
    %v246 = vpack.c.b16 %v189, %v188
    %v247 = vpack.c.b16 %v191, %v190
    %v248 = vpack.c.b16 %v193, %v192
    %v249 = vpack.c.b16 %v195, %v194
    %v250 = vpack.c.b16 %v197, %v196
    %v251 = vpack.c.b16 %v199, %v198
    %v252 = vpack.c.b16 %v201, %v200
    %v253 = vpack.c.b16 %v203, %v202
    %v254 = vpack.c.b16 %v205, %v204
    %v255 = vpack.c.b16 %v207, %v206
    %v256 = vpack.c.b16 %v209, %v208
    %v257 = vpack.c.b16 %v211, %v210
    %v258 = vpack.c.b16 %v213, %v212
    %v259 = vpack.c.b16 %v215, %v214
    %v260 = vpack.c.b16 %v217, %v216
    %v261 = vpack.c.b16 %v219, %v218
    %v262 = vpack.c.b16 %v221, %v220
    %v263 = vpack.c.b16 %v223, %v222
    %v264 = vpack.c.b16 %v225, %v224
    %v265 = vpack.c.b16 %v227, %v226
    %v266 = vpack.c.b16 %v229, %v228
    %v267 = vpack.c.b16 %v231, %v230
    %v268 = vpack.c.b16 %v233, %v232
    %v269 = vpack.c.b16 %v235, %v234
    %v270 = vpack.c.b16 %v237, %v236
    %v271 = vpack.c.b16 %v239, %v238
    %v276 = vunpack.c.l.b16 %v104
    %v277 = vunpack.c.l.b16 %v105
    %v278 = vunpack.c.l.b16 %v106
    %v279 = vunpack.c.l.b16 %v107
    %v280 = vpack.c.b16 %v277, %v276
    %v281 = vpack.c.b16 %v279, %v278
    %vm284 = vcmask 261120
    %v286 = vsel %vm284, %v240, 0
    %v289 = vsel %vm284, %v241, 0
    %v292 = vsel %vm284, %v242, 0
    %v295 = vsel %vm284, %v243, 0
    %v298 = vsel %vm284, %v244, 0
    %v301 = vsel %vm284, %v245, 0
    %v304 = vsel %vm284, %v246, 0
    %v307 = vsel %vm284, %v247, 0
    %v310 = vsel %vm284, %v248, 0
    %v313 = vsel %vm284, %v249, 0
    %v316 = vsel %vm284, %v250, 0
    %v319 = vsel %vm284, %v251, 0
    %v322 = vsel %vm284, %v252, 0
    %v325 = vsel %vm284, %v253, 0
    %v328 = vsel %vm284, %v254, 0
    %v331 = vsel %vm284, %v255, 0
    %v334 = vsel %vm284, %v256, 0
    %v337 = vsel %vm284, %v257, 0
    %v340 = vsel %vm284, %v258, 0
    %v343 = vsel %vm284, %v259, 0
    %v346 = vsel %vm284, %v260, 0
    %v349 = vsel %vm284, %v261, 0
    %v352 = vsel %vm284, %v262, 0
    %v355 = vsel %vm284, %v263, 0
    %v358 = vsel %vm284, %v264, 0
    %v361 = vsel %vm284, %v265, 0
    %v364 = vsel %vm284, %v266, 0
    %v367 = vsel %vm284, %v267, 0
    %v370 = vsel %vm284, %v268, 0
    %v373 = vsel %vm284, %v269, 0
    %v376 = vsel %vm284, %v270, 0
    %v379 = vsel %vm284, %v271, 0
    %381 = vmatpush.bf16.msra.mxu0 0
    %382 = vmatpush.bf16.msra.mxu0 0
    %383 = vmatpush.bf16.msra.mxu0 0
    %384 = vmatpush.bf16.msra.mxu0 0
    %385 = vmatpush.bf16.msra.mxu0 0
    %386 = vmatpush.bf16.msra.mxu0 0
    %387 = vmatpush.bf16.msra.mxu0 %v281
    %388 = vmatpush.bf16.msra.mxu0 %v280
    %389 = vmatmul.bf16.gmra.mxu0 %v286
    %v390 = vpop.f32.mrf.mxu0
    %v391 = vadd.f32 %v110, %v390
    %v392 = vpop.f32.mrf.mxu0
    %v393 = vadd.f32 %v110, %v392
    %394 = vmatmul.bf16.gmra.mxu0 %v289
    %v395 = vpop.f32.mrf.mxu0
    %v396 = vadd.f32 %v110, %v395
    %v397 = vpop.f32.mrf.mxu0
    %v398 = vadd.f32 %v110, %v397
    %399 = vmatmul.bf16.gmra.mxu0 %v292
    %v400 = vpop.f32.mrf.mxu0
    %v401 = vadd.f32 %v110, %v400
    %v402 = vpop.f32.mrf.mxu0
    %v403 = vadd.f32 %v110, %v402
    %404 = vmatmul.bf16.gmra.mxu0 %v295
    %v405 = vpop.f32.mrf.mxu0
    %v406 = vadd.f32 %v110, %v405
    %v407 = vpop.f32.mrf.mxu0
    %v408 = vadd.f32 %v110, %v407
    %409 = vmatmul.bf16.gmra.mxu0 %v298
    %v410 = vpop.f32.mrf.mxu0
    %v411 = vadd.f32 %v110, %v410
    %v412 = vpop.f32.mrf.mxu0
    %v413 = vadd.f32 %v110, %v412
    %414 = vmatmul.bf16.gmra.mxu0 %v301
    %v415 = vpop.f32.mrf.mxu0
    %v416 = vadd.f32 %v110, %v415
    %v417 = vpop.f32.mrf.mxu0
    %v418 = vadd.f32 %v110, %v417
    %419 = vmatmul.bf16.gmra.mxu0 %v304
    %v420 = vpop.f32.mrf.mxu0
    %v421 = vadd.f32 %v110, %v420
    %v422 = vpop.f32.mrf.mxu0
    %v423 = vadd.f32 %v110, %v422
    %424 = vmatmul.bf16.gmra.mxu0 %v307
    %v425 = vpop.f32.mrf.mxu0
    %v426 = vadd.f32 %v110, %v425
    %v427 = vpop.f32.mrf.mxu0
    %v428 = vadd.f32 %v110, %v427
    %429 = vmatmul.bf16.gmra.mxu0 %v310
    %v430 = vpop.f32.mrf.mxu0
    %v431 = vadd.f32 %v110, %v430
    %v432 = vpop.f32.mrf.mxu0
    %v433 = vadd.f32 %v110, %v432
    %434 = vmatmul.bf16.gmra.mxu0 %v313
    %v435 = vpop.f32.mrf.mxu0
    %v436 = vadd.f32 %v110, %v435
    %v437 = vpop.f32.mrf.mxu0
    %v438 = vadd.f32 %v110, %v437
    %439 = vmatmul.bf16.gmra.mxu0 %v316
    %v440 = vpop.f32.mrf.mxu0
    %v441 = vadd.f32 %v110, %v440
    %v442 = vpop.f32.mrf.mxu0
    %v443 = vadd.f32 %v110, %v442
    %444 = vmatmul.bf16.gmra.mxu0 %v319
    %v445 = vpop.f32.mrf.mxu0
    %v446 = vadd.f32 %v110, %v445
    %v447 = vpop.f32.mrf.mxu0
    %v448 = vadd.f32 %v110, %v447
    %449 = vmatmul.bf16.gmra.mxu0 %v322
    %v450 = vpop.f32.mrf.mxu0
    %v451 = vadd.f32 %v110, %v450
    %v452 = vpop.f32.mrf.mxu0
    %v453 = vadd.f32 %v110, %v452
    %454 = vmatmul.bf16.gmra.mxu0 %v325
    %v455 = vpop.f32.mrf.mxu0
    %v456 = vadd.f32 %v110, %v455
    %v457 = vpop.f32.mrf.mxu0
    %v458 = vadd.f32 %v110, %v457
    %459 = vmatmul.bf16.gmra.mxu0 %v328
    %v460 = vpop.f32.mrf.mxu0
    %v461 = vadd.f32 %v110, %v460
    %v462 = vpop.f32.mrf.mxu0
    %v463 = vadd.f32 %v110, %v462
    %464 = vmatmul.bf16.gmra.mxu0 %v331
    %v465 = vpop.f32.mrf.mxu0
    %v466 = vadd.f32 %v110, %v465
    %v467 = vpop.f32.mrf.mxu0
    %v468 = vadd.f32 %v110, %v467
    %469 = vmatmul.bf16.gmra.mxu0 %v334
    %v470 = vpop.f32.mrf.mxu0
    %v471 = vadd.f32 %v110, %v470
    %v472 = vpop.f32.mrf.mxu0
    %v473 = vadd.f32 %v110, %v472
    %474 = vmatmul.bf16.gmra.mxu0 %v337
    %v475 = vpop.f32.mrf.mxu0
    %v476 = vadd.f32 %v110, %v475
    %v477 = vpop.f32.mrf.mxu0
    %v478 = vadd.f32 %v110, %v477
    %479 = vmatmul.bf16.gmra.mxu0 %v340
    %v480 = vpop.f32.mrf.mxu0
    %v481 = vadd.f32 %v110, %v480
    %v482 = vpop.f32.mrf.mxu0
    %v483 = vadd.f32 %v110, %v482
    %484 = vmatmul.bf16.gmra.mxu0 %v343
    %v485 = vpop.f32.mrf.mxu0
    %v486 = vadd.f32 %v110, %v485
    %v487 = vpop.f32.mrf.mxu0
    %v488 = vadd.f32 %v110, %v487
    %489 = vmatmul.bf16.gmra.mxu0 %v346
    %v490 = vpop.f32.mrf.mxu0
    %v491 = vadd.f32 %v110, %v490
    %v492 = vpop.f32.mrf.mxu0
    %v493 = vadd.f32 %v110, %v492
    %494 = vmatmul.bf16.gmra.mxu0 %v349
    %v495 = vpop.f32.mrf.mxu0
    %v496 = vadd.f32 %v110, %v495
    %v497 = vpop.f32.mrf.mxu0
    %v498 = vadd.f32 %v110, %v497
    %499 = vmatmul.bf16.gmra.mxu0 %v352
    %v500 = vpop.f32.mrf.mxu0
    %v501 = vadd.f32 %v110, %v500
    %v502 = vpop.f32.mrf.mxu0
    %v503 = vadd.f32 %v110, %v502
    %504 = vmatmul.bf16.gmra.mxu0 %v355
    %v505 = vpop.f32.mrf.mxu0
    %v506 = vadd.f32 %v110, %v505
    %v507 = vpop.f32.mrf.mxu0
    %v508 = vadd.f32 %v110, %v507
    %509 = vmatmul.bf16.gmra.mxu0 %v358
    %v510 = vpop.f32.mrf.mxu0
    %v511 = vadd.f32 %v110, %v510
    %v512 = vpop.f32.mrf.mxu0
    %v513 = vadd.f32 %v110, %v512
    %514 = vmatmul.bf16.gmra.mxu0 %v361
    %v515 = vpop.f32.mrf.mxu0
    %v516 = vadd.f32 %v110, %v515
    %v517 = vpop.f32.mrf.mxu0
    %v518 = vadd.f32 %v110, %v517
    %519 = vmatmul.bf16.gmra.mxu0 %v364
    %v520 = vpop.f32.mrf.mxu0
    %v521 = vadd.f32 %v110, %v520
    %v522 = vpop.f32.mrf.mxu0
    %v523 = vadd.f32 %v110, %v522
    %524 = vmatmul.bf16.gmra.mxu0 %v367
    %v525 = vpop.f32.mrf.mxu0
    %v526 = vadd.f32 %v110, %v525
    %v527 = vpop.f32.mrf.mxu0
    %v528 = vadd.f32 %v110, %v527
    %529 = vmatmul.bf16.gmra.mxu0 %v370
    %v530 = vpop.f32.mrf.mxu0
    %v531 = vadd.f32 %v110, %v530
    %v532 = vpop.f32.mrf.mxu0
    %v533 = vadd.f32 %v110, %v532
    %534 = vmatmul.bf16.gmra.mxu0 %v373
    %v535 = vpop.f32.mrf.mxu0
    %v536 = vadd.f32 %v110, %v535
    %v537 = vpop.f32.mrf.mxu0
    %v538 = vadd.f32 %v110, %v537
    %539 = vmatmul.bf16.gmra.mxu0 %v376
    %v540 = vpop.f32.mrf.mxu0
    %v541 = vadd.f32 %v110, %v540
    %v542 = vpop.f32.mrf.mxu0
    %v543 = vadd.f32 %v110, %v542
    %544 = vmatmul.bf16.gmra.mxu0 %v379
    %v545 = vpop.f32.mrf.mxu0
    %v546 = vadd.f32 %v110, %v545
    %v547 = vpop.f32.mrf.mxu0
    %v548 = vadd.f32 %v110, %v547
    %549 = vdwg.mxu0
    %v550 = vmax.f32 %v391, 0.0
    %v551 = vmax.f32 %v393, 0.0
    %v552 = vmax.f32 %v396, 0.0
    %v553 = vmax.f32 %v398, 0.0
    %v554 = vmax.f32 %v401, 0.0
    %v555 = vmax.f32 %v403, 0.0
    %v556 = vmax.f32 %v406, 0.0
    %v557 = vmax.f32 %v408, 0.0
    %v558 = vmax.f32 %v411, 0.0
    %v559 = vmax.f32 %v413, 0.0
    %v560 = vmax.f32 %v416, 0.0
    %v561 = vmax.f32 %v418, 0.0
    %v562 = vmax.f32 %v421, 0.0
    %v563 = vmax.f32 %v423, 0.0
    %v564 = vmax.f32 %v426, 0.0
    %v565 = vmax.f32 %v428, 0.0
    %v566 = vmax.f32 %v431, 0.0
    %v567 = vmax.f32 %v433, 0.0
    %v568 = vmax.f32 %v436, 0.0
    %v569 = vmax.f32 %v438, 0.0
    %v570 = vmax.f32 %v441, 0.0
    %v571 = vmax.f32 %v443, 0.0
    %v572 = vmax.f32 %v446, 0.0
    %v573 = vmax.f32 %v448, 0.0
    %v574 = vmax.f32 %v451, 0.0
    %v575 = vmax.f32 %v453, 0.0
    %v576 = vmax.f32 %v456, 0.0
    %v577 = vmax.f32 %v458, 0.0
    %v578 = vmax.f32 %v461, 0.0
    %v579 = vmax.f32 %v463, 0.0
    %v580 = vmax.f32 %v466, 0.0
    %v581 = vmax.f32 %v468, 0.0
    %v582 = vmax.f32 %v471, 0.0
    %v583 = vmax.f32 %v473, 0.0
    %v584 = vmax.f32 %v476, 0.0
    %v585 = vmax.f32 %v478, 0.0
    %v586 = vmax.f32 %v481, 0.0
    %v587 = vmax.f32 %v483, 0.0
    %v588 = vmax.f32 %v486, 0.0
    %v589 = vmax.f32 %v488, 0.0
    %v590 = vmax.f32 %v491, 0.0
    %v591 = vmax.f32 %v493, 0.0
    %v592 = vmax.f32 %v496, 0.0
    %v593 = vmax.f32 %v498, 0.0
    %v594 = vmax.f32 %v501, 0.0
    %v595 = vmax.f32 %v503, 0.0
    %v596 = vmax.f32 %v506, 0.0
    %v597 = vmax.f32 %v508, 0.0
    %v598 = vmax.f32 %v511, 0.0
    %v599 = vmax.f32 %v513, 0.0
    %v600 = vmax.f32 %v516, 0.0
    %v601 = vmax.f32 %v518, 0.0
    %v602 = vmax.f32 %v521, 0.0
    %v603 = vmax.f32 %v523, 0.0
    %v604 = vmax.f32 %v526, 0.0
    %v605 = vmax.f32 %v528, 0.0
    %v606 = vmax.f32 %v531, 0.0
    %v607 = vmax.f32 %v533, 0.0
    %v608 = vmax.f32 %v536, 0.0
    %v609 = vmax.f32 %v538, 0.0
    %v610 = vmax.f32 %v541, 0.0
    %v611 = vmax.f32 %v543, 0.0
    %v612 = vmax.f32 %v546, 0.0
    %v613 = vmax.f32 %v548, 0.0
    %v614 = vpack.c.bf16 %v551, %v550
    %v615 = vpack.c.bf16 %v553, %v552
    %v616 = vpack.c.bf16 %v555, %v554
    %v617 = vpack.c.bf16 %v557, %v556
    %v618 = vpack.c.bf16 %v559, %v558
    %v619 = vpack.c.bf16 %v561, %v560
    %v620 = vpack.c.bf16 %v563, %v562
    %v621 = vpack.c.bf16 %v565, %v564
    %v622 = vpack.c.bf16 %v567, %v566
    %v623 = vpack.c.bf16 %v569, %v568
    %v624 = vpack.c.bf16 %v571, %v570
    %v625 = vpack.c.bf16 %v573, %v572
    %v626 = vpack.c.bf16 %v575, %v574
    %v627 = vpack.c.bf16 %v577, %v576
    %v628 = vpack.c.bf16 %v579, %v578
    %v629 = vpack.c.bf16 %v581, %v580
    %v630 = vpack.c.bf16 %v583, %v582
    %v631 = vpack.c.bf16 %v585, %v584
    %v632 = vpack.c.bf16 %v587, %v586
    %v633 = vpack.c.bf16 %v589, %v588
    %v634 = vpack.c.bf16 %v591, %v590
    %v635 = vpack.c.bf16 %v593, %v592
    %v636 = vpack.c.bf16 %v595, %v594
    %v637 = vpack.c.bf16 %v597, %v596
    %v638 = vpack.c.bf16 %v599, %v598
    %v639 = vpack.c.bf16 %v601, %v600
    %v640 = vpack.c.bf16 %v603, %v602
    %v641 = vpack.c.bf16 %v605, %v604
    %v642 = vpack.c.bf16 %v607, %v606
    %v643 = vpack.c.bf16 %v609, %v608
    %v644 = vpack.c.bf16 %v611, %v610
    %v645 = vpack.c.bf16 %v613, %v612
    %v646 = vld [vmem:[%s3] sm:$0xf]
    %v647 = vld [vmem:[%s3 + $0x4] sm:$0xf]
    %v648 = vld [vmem:[%s3 + $0x8] sm:$0xf]
    %v649 = vld [vmem:[%s3 + $0xc] sm:$0xf]
    %v650 = vld [vmem:[%s3 + $0x10] sm:$0xf]
    %v651 = vld [vmem:[%s3 + $0x14] sm:$0xf]
    %v652 = vld [vmem:[%s3 + $0x18] sm:$0xf]
    %v653 = vld [vmem:[%s3 + $0x1c] sm:$0xf]
    %v654 = vld [vmem:[%s3 + $0x20] sm:$0xf]
    %v655 = vld [vmem:[%s3 + $0x24] sm:$0xf]
    %v656 = vld [vmem:[%s3 + $0x28] sm:$0xf]
    %v657 = vld [vmem:[%s3 + $0x2c] sm:$0xf]
    %v658 = vld [vmem:[%s3 + $0x30] sm:$0xf]
    %v659 = vld [vmem:[%s3 + $0x34] sm:$0xf]
    %v660 = vld [vmem:[%s3 + $0x38] sm:$0xf]
    %v661 = vld [vmem:[%s3 + $0x3c] sm:$0xf]
    %v662 = vld [vmem:[%s4] sm:$0x1]
    %v664 = vperm.slane %v662, 0
    %v682 = vunpack.c.l.b16 %v646
    %v683 = vunpack.c.l.b16 %v647
    %v684 = vunpack.c.l.b16 %v648
    %v685 = vunpack.c.l.b16 %v649
    %v686 = vunpack.c.l.b16 %v650
    %v687 = vunpack.c.l.b16 %v651
    %v688 = vunpack.c.l.b16 %v652
    %v689 = vunpack.c.l.b16 %v653
    %v690 = vunpack.c.l.b16 %v654
    %v691 = vunpack.c.l.b16 %v655
    %v692 = vunpack.c.l.b16 %v656
    %v693 = vunpack.c.l.b16 %v657
    %v694 = vunpack.c.l.b16 %v658
    %v695 = vunpack.c.l.b16 %v659
    %v696 = vunpack.c.l.b16 %v660
    %v697 = vunpack.c.l.b16 %v661
    %v698 = vpack.c.b16 %v683, %v682
    %v699 = vpack.c.b16 %v685, %v684
    %v700 = vpack.c.b16 %v687, %v686
    %v701 = vpack.c.b16 %v689, %v688
    %v702 = vpack.c.b16 %v691, %v690
    %v703 = vpack.c.b16 %v693, %v692
    %v704 = vpack.c.b16 %v695, %v694
    %v705 = vpack.c.b16 %v697, %v696
    %714 = vmatpush.bf16.msra.mxu0 %v705
    %715 = vmatpush.bf16.msra.mxu0 %v704
    %716 = vmatpush.bf16.msra.mxu0 %v703
    %717 = vmatpush.bf16.msra.mxu0 %v702
    %718 = vmatpush.bf16.msra.mxu0 %v701
    %719 = vmatpush.bf16.msra.mxu0 %v700
    %720 = vmatpush.bf16.msra.mxu0 %v699
    %721 = vmatpush.bf16.msra.mxu0 %v698
    %722 = vmatmul.bf16.gmra.mxu0 %v614
    %v723 = vpop.f32.mrf.mxu0
    %v724 = vadd.f32 %v664, %v723
    %v725 = vpop.f32.mrf.mxu0
    %v726 = vadd.f32 %v664, %v725
    %727 = vmatmul.bf16.gmra.mxu0 %v615
    %v728 = vpop.f32.mrf.mxu0
    %v729 = vadd.f32 %v664, %v728
    %v730 = vpop.f32.mrf.mxu0
    %v731 = vadd.f32 %v664, %v730
    %732 = vmatmul.bf16.gmra.mxu0 %v616
    %v733 = vpop.f32.mrf.mxu0
    %v734 = vadd.f32 %v664, %v733
    %v735 = vpop.f32.mrf.mxu0
    %v736 = vadd.f32 %v664, %v735
    %737 = vmatmul.bf16.gmra.mxu0 %v617
    %v738 = vpop.f32.mrf.mxu0
    %v739 = vadd.f32 %v664, %v738
    %v740 = vpop.f32.mrf.mxu0
    %v741 = vadd.f32 %v664, %v740
    %742 = vmatmul.bf16.gmra.mxu0 %v618
    %v743 = vpop.f32.mrf.mxu0
    %v744 = vadd.f32 %v664, %v743
    %v745 = vpop.f32.mrf.mxu0
    %v746 = vadd.f32 %v664, %v745
    %747 = vmatmul.bf16.gmra.mxu0 %v619
    %v748 = vpop.f32.mrf.mxu0
    %v749 = vadd.f32 %v664, %v748
    %v750 = vpop.f32.mrf.mxu0
    %v751 = vadd.f32 %v664, %v750
    %752 = vmatmul.bf16.gmra.mxu0 %v620
    %v753 = vpop.f32.mrf.mxu0
    %v754 = vadd.f32 %v664, %v753
    %v755 = vpop.f32.mrf.mxu0
    %v756 = vadd.f32 %v664, %v755
    %757 = vmatmul.bf16.gmra.mxu0 %v621
    %v758 = vpop.f32.mrf.mxu0
    %v759 = vadd.f32 %v664, %v758
    %v760 = vpop.f32.mrf.mxu0
    %v761 = vadd.f32 %v664, %v760
    %762 = vmatmul.bf16.gmra.mxu0 %v622
    %v763 = vpop.f32.mrf.mxu0
    %v764 = vadd.f32 %v664, %v763
    %v765 = vpop.f32.mrf.mxu0
    %v766 = vadd.f32 %v664, %v765
    %767 = vmatmul.bf16.gmra.mxu0 %v623
    %v768 = vpop.f32.mrf.mxu0
    %v769 = vadd.f32 %v664, %v768
    %v770 = vpop.f32.mrf.mxu0
    %v771 = vadd.f32 %v664, %v770
    %772 = vmatmul.bf16.gmra.mxu0 %v624
    %v773 = vpop.f32.mrf.mxu0
    %v774 = vadd.f32 %v664, %v773
    %v775 = vpop.f32.mrf.mxu0
    %v776 = vadd.f32 %v664, %v775
    %777 = vmatmul.bf16.gmra.mxu0 %v625
    %v778 = vpop.f32.mrf.mxu0
    %v779 = vadd.f32 %v664, %v778
    %v780 = vpop.f32.mrf.mxu0
    %v781 = vadd.f32 %v664, %v780
    %782 = vmatmul.bf16.gmra.mxu0 %v626
    %v783 = vpop.f32.mrf.mxu0
    %v784 = vadd.f32 %v664, %v783
    %v785 = vpop.f32.mrf.mxu0
    %v786 = vadd.f32 %v664, %v785
    %787 = vmatmul.bf16.gmra.mxu0 %v627
    %v788 = vpop.f32.mrf.mxu0
    %v789 = vadd.f32 %v664, %v788
    %v790 = vpop.f32.mrf.mxu0
    %v791 = vadd.f32 %v664, %v790
    %792 = vmatmul.bf16.gmra.mxu0 %v628
    %v793 = vpop.f32.mrf.mxu0
    %v794 = vadd.f32 %v664, %v793
    %v795 = vpop.f32.mrf.mxu0
    %v796 = vadd.f32 %v664, %v795
    %797 = vmatmul.bf16.gmra.mxu0 %v629
    %v798 = vpop.f32.mrf.mxu0
    %v799 = vadd.f32 %v664, %v798
    %v800 = vpop.f32.mrf.mxu0
    %v801 = vadd.f32 %v664, %v800
    %802 = vmatmul.bf16.gmra.mxu0 %v630
    %v803 = vpop.f32.mrf.mxu0
    %v804 = vadd.f32 %v664, %v803
    %v805 = vpop.f32.mrf.mxu0
    %v806 = vadd.f32 %v664, %v805
    %807 = vmatmul.bf16.gmra.mxu0 %v631
    %v808 = vpop.f32.mrf.mxu0
    %v809 = vadd.f32 %v664, %v808
    %v810 = vpop.f32.mrf.mxu0
    %v811 = vadd.f32 %v664, %v810
    %812 = vmatmul.bf16.gmra.mxu0 %v632
    %v813 = vpop.f32.mrf.mxu0
    %v814 = vadd.f32 %v664, %v813
    %v815 = vpop.f32.mrf.mxu0
    %v816 = vadd.f32 %v664, %v815
    %817 = vmatmul.bf16.gmra.mxu0 %v633
    %v818 = vpop.f32.mrf.mxu0
    %v819 = vadd.f32 %v664, %v818
    %v820 = vpop.f32.mrf.mxu0
    %v821 = vadd.f32 %v664, %v820
    %822 = vmatmul.bf16.gmra.mxu0 %v634
    %v823 = vpop.f32.mrf.mxu0
    %v824 = vadd.f32 %v664, %v823
    %v825 = vpop.f32.mrf.mxu0
    %v826 = vadd.f32 %v664, %v825
    %827 = vmatmul.bf16.gmra.mxu0 %v635
    %v828 = vpop.f32.mrf.mxu0
    %v829 = vadd.f32 %v664, %v828
    %v830 = vpop.f32.mrf.mxu0
    %v831 = vadd.f32 %v664, %v830
    %832 = vmatmul.bf16.gmra.mxu0 %v636
    %v833 = vpop.f32.mrf.mxu0
    %v834 = vadd.f32 %v664, %v833
    %v835 = vpop.f32.mrf.mxu0
    %v836 = vadd.f32 %v664, %v835
    %837 = vmatmul.bf16.gmra.mxu0 %v637
    %v838 = vpop.f32.mrf.mxu0
    %v839 = vadd.f32 %v664, %v838
    %v840 = vpop.f32.mrf.mxu0
    %v841 = vadd.f32 %v664, %v840
    %842 = vmatmul.bf16.gmra.mxu0 %v638
    %v843 = vpop.f32.mrf.mxu0
    %v844 = vadd.f32 %v664, %v843
    %v845 = vpop.f32.mrf.mxu0
    %v846 = vadd.f32 %v664, %v845
    %847 = vmatmul.bf16.gmra.mxu0 %v639
    %v848 = vpop.f32.mrf.mxu0
    %v849 = vadd.f32 %v664, %v848
    %v850 = vpop.f32.mrf.mxu0
    %v851 = vadd.f32 %v664, %v850
    %852 = vmatmul.bf16.gmra.mxu0 %v640
    %v853 = vpop.f32.mrf.mxu0
    %v854 = vadd.f32 %v664, %v853
    %v855 = vpop.f32.mrf.mxu0
    %v856 = vadd.f32 %v664, %v855
    %857 = vmatmul.bf16.gmra.mxu0 %v641
    %v858 = vpop.f32.mrf.mxu0
    %v859 = vadd.f32 %v664, %v858
    %v860 = vpop.f32.mrf.mxu0
    %v861 = vadd.f32 %v664, %v860
    %862 = vmatmul.bf16.gmra.mxu0 %v642
    %v863 = vpop.f32.mrf.mxu0
    %v864 = vadd.f32 %v664, %v863
    %v865 = vpop.f32.mrf.mxu0
    %v866 = vadd.f32 %v664, %v865
    %867 = vmatmul.bf16.gmra.mxu0 %v643
    %v868 = vpop.f32.mrf.mxu0
    %v869 = vadd.f32 %v664, %v868
    %v870 = vpop.f32.mrf.mxu0
    %v871 = vadd.f32 %v664, %v870
    %872 = vmatmul.bf16.gmra.mxu0 %v644
    %v873 = vpop.f32.mrf.mxu0
    %v874 = vadd.f32 %v664, %v873
    %v875 = vpop.f32.mrf.mxu0
    %v876 = vadd.f32 %v664, %v875
    %877 = vmatmul.bf16.gmra.mxu0 %v645
    %v878 = vpop.f32.mrf.mxu0
    %v879 = vadd.f32 %v664, %v878
    %v880 = vpop.f32.mrf.mxu0
    %v881 = vadd.f32 %v664, %v880
    %882 = vdwg.mxu0
    %v883 = vmax.f32 %v724, 0.0
    %v884 = vmax.f32 %v726, 0.0
    %v885 = vmax.f32 %v729, 0.0
    %v886 = vmax.f32 %v731, 0.0
    %v887 = vmax.f32 %v734, 0.0
    %v888 = vmax.f32 %v736, 0.0
    %v889 = vmax.f32 %v739, 0.0
    %v890 = vmax.f32 %v741, 0.0
    %v891 = vmax.f32 %v744, 0.0
    %v892 = vmax.f32 %v746, 0.0
    %v893 = vmax.f32 %v749, 0.0
    %v894 = vmax.f32 %v751, 0.0
    %v895 = vmax.f32 %v754, 0.0
    %v896 = vmax.f32 %v756, 0.0
    %v897 = vmax.f32 %v759, 0.0
    %v898 = vmax.f32 %v761, 0.0
    %v899 = vmax.f32 %v764, 0.0
    %v900 = vmax.f32 %v766, 0.0
    %v901 = vmax.f32 %v769, 0.0
    %v902 = vmax.f32 %v771, 0.0
    %v903 = vmax.f32 %v774, 0.0
    %v904 = vmax.f32 %v776, 0.0
    %v905 = vmax.f32 %v779, 0.0
    %v906 = vmax.f32 %v781, 0.0
    %v907 = vmax.f32 %v784, 0.0
    %v908 = vmax.f32 %v786, 0.0
    %v909 = vmax.f32 %v789, 0.0
    %v910 = vmax.f32 %v791, 0.0
    %v911 = vmax.f32 %v794, 0.0
    %v912 = vmax.f32 %v796, 0.0
    %v913 = vmax.f32 %v799, 0.0
    %v914 = vmax.f32 %v801, 0.0
    %v915 = vmax.f32 %v804, 0.0
    %v916 = vmax.f32 %v806, 0.0
    %v917 = vmax.f32 %v809, 0.0
    %v918 = vmax.f32 %v811, 0.0
    %v919 = vmax.f32 %v814, 0.0
    %v920 = vmax.f32 %v816, 0.0
    %v921 = vmax.f32 %v819, 0.0
    %v922 = vmax.f32 %v821, 0.0
    %v923 = vmax.f32 %v824, 0.0
    %v924 = vmax.f32 %v826, 0.0
    %v925 = vmax.f32 %v829, 0.0
    %v926 = vmax.f32 %v831, 0.0
    %v927 = vmax.f32 %v834, 0.0
    %v928 = vmax.f32 %v836, 0.0
    %v929 = vmax.f32 %v839, 0.0
    %v930 = vmax.f32 %v841, 0.0
    %v931 = vmax.f32 %v844, 0.0
    %v932 = vmax.f32 %v846, 0.0
    %v933 = vmax.f32 %v849, 0.0
    %v934 = vmax.f32 %v851, 0.0
    %v935 = vmax.f32 %v854, 0.0
    %v936 = vmax.f32 %v856, 0.0
    %v937 = vmax.f32 %v859, 0.0
    %v938 = vmax.f32 %v861, 0.0
    %v939 = vmax.f32 %v864, 0.0
    %v940 = vmax.f32 %v866, 0.0
    %v941 = vmax.f32 %v869, 0.0
    %v942 = vmax.f32 %v871, 0.0
    %v943 = vmax.f32 %v874, 0.0
    %v944 = vmax.f32 %v876, 0.0
    %v945 = vmax.f32 %v879, 0.0
    %v946 = vmax.f32 %v881, 0.0
    %v947 = vpack.c.bf16 %v884, %v883
    %v948 = vpack.c.bf16 %v886, %v885
    %v949 = vpack.c.bf16 %v888, %v887
    %v950 = vpack.c.bf16 %v890, %v889
    %v951 = vpack.c.bf16 %v892, %v891
    %v952 = vpack.c.bf16 %v894, %v893
    %v953 = vpack.c.bf16 %v896, %v895
    %v954 = vpack.c.bf16 %v898, %v897
    %v955 = vpack.c.bf16 %v900, %v899
    %v956 = vpack.c.bf16 %v902, %v901
    %v957 = vpack.c.bf16 %v904, %v903
    %v958 = vpack.c.bf16 %v906, %v905
    %v959 = vpack.c.bf16 %v908, %v907
    %v960 = vpack.c.bf16 %v910, %v909
    %v961 = vpack.c.bf16 %v912, %v911
    %v962 = vpack.c.bf16 %v914, %v913
    %v963 = vpack.c.bf16 %v916, %v915
    %v964 = vpack.c.bf16 %v918, %v917
    %v965 = vpack.c.bf16 %v920, %v919
    %v966 = vpack.c.bf16 %v922, %v921
    %v967 = vpack.c.bf16 %v924, %v923
    %v968 = vpack.c.bf16 %v926, %v925
    %v969 = vpack.c.bf16 %v928, %v927
    %v970 = vpack.c.bf16 %v930, %v929
    %v971 = vpack.c.bf16 %v932, %v931
    %v972 = vpack.c.bf16 %v934, %v933
    %v973 = vpack.c.bf16 %v936, %v935
    %v974 = vpack.c.bf16 %v938, %v937
    %v975 = vpack.c.bf16 %v940, %v939
    %v976 = vpack.c.bf16 %v942, %v941
    %v977 = vpack.c.bf16 %v944, %v943
    %v978 = vpack.c.bf16 %v946, %v945
    %v979 = vld [vmem:[%s5] sm:$0xf]
    %v980 = vld [vmem:[%s5 + $0x4] sm:$0xf]
    %v981 = vld [vmem:[%s5 + $0x8] sm:$0xf]
    %v982 = vld [vmem:[%s5 + $0xc] sm:$0xf]
    %v983 = vld [vmem:[%s5 + $0x10] sm:$0xf]
    %v984 = vld [vmem:[%s5 + $0x14] sm:$0xf]
    %v985 = vld [vmem:[%s5 + $0x18] sm:$0xf]
    %v986 = vld [vmem:[%s5 + $0x1c] sm:$0xf]
    %v987 = vld [vmem:[%s5 + $0x20] sm:$0xf]
    %v988 = vld [vmem:[%s5 + $0x24] sm:$0xf]
    %v989 = vld [vmem:[%s5 + $0x28] sm:$0xf]
    %v990 = vld [vmem:[%s5 + $0x2c] sm:$0xf]
    %v991 = vld [vmem:[%s5 + $0x30] sm:$0xf]
    %v992 = vld [vmem:[%s5 + $0x34] sm:$0xf]
    %v993 = vld [vmem:[%s5 + $0x38] sm:$0xf]
    %v994 = vld [vmem:[%s5 + $0x3c] sm:$0xf]
    %v995 = vld [vmem:[%s6] sm:$0x1]
    %v997 = vperm.slane %v995, 0
    %v1015 = vunpack.c.l.b16 %v979
    %v1016 = vunpack.c.l.b16 %v980
    %v1017 = vunpack.c.l.b16 %v981
    %v1018 = vunpack.c.l.b16 %v982
    %v1019 = vunpack.c.l.b16 %v983
    %v1020 = vunpack.c.l.b16 %v984
    %v1021 = vunpack.c.l.b16 %v985
    %v1022 = vunpack.c.l.b16 %v986
    %v1023 = vunpack.c.l.b16 %v987
    %v1024 = vunpack.c.l.b16 %v988
    %v1025 = vunpack.c.l.b16 %v989
    %v1026 = vunpack.c.l.b16 %v990
    %v1027 = vunpack.c.l.b16 %v991
    %v1028 = vunpack.c.l.b16 %v992
    %v1029 = vunpack.c.l.b16 %v993
    %v1030 = vunpack.c.l.b16 %v994
    %v1031 = vpack.c.b16 %v1016, %v1015
    %v1032 = vpack.c.b16 %v1018, %v1017
    %v1033 = vpack.c.b16 %v1020, %v1019
    %v1034 = vpack.c.b16 %v1022, %v1021
    %v1035 = vpack.c.b16 %v1024, %v1023
    %v1036 = vpack.c.b16 %v1026, %v1025
    %v1037 = vpack.c.b16 %v1028, %v1027
    %v1038 = vpack.c.b16 %v1030, %v1029
    %1047 = vmatpush.bf16.msra.mxu0 %v1038
    %1048 = vmatpush.bf16.msra.mxu0 %v1037
    %1049 = vmatpush.bf16.msra.mxu0 %v1036
    %1050 = vmatpush.bf16.msra.mxu0 %v1035
    %1051 = vmatpush.bf16.msra.mxu0 %v1034
    %1052 = vmatpush.bf16.msra.mxu0 %v1033
    %1053 = vmatpush.bf16.msra.mxu0 %v1032
    %1054 = vmatpush.bf16.msra.mxu0 %v1031
    %1055 = vmatmul.bf16.gmra.mxu0 %v947
    %v1056 = vpop.f32.mrf.mxu0
    %v1057 = vadd.f32 %v997, %v1056
    %v1058 = vpop.f32.mrf.mxu0
    %v1059 = vadd.f32 %v997, %v1058
    %1060 = vmatmul.bf16.gmra.mxu0 %v948
    %v1061 = vpop.f32.mrf.mxu0
    %v1062 = vadd.f32 %v997, %v1061
    %v1063 = vpop.f32.mrf.mxu0
    %v1064 = vadd.f32 %v997, %v1063
    %1065 = vmatmul.bf16.gmra.mxu0 %v949
    %v1066 = vpop.f32.mrf.mxu0
    %v1067 = vadd.f32 %v997, %v1066
    %v1068 = vpop.f32.mrf.mxu0
    %v1069 = vadd.f32 %v997, %v1068
    %1070 = vmatmul.bf16.gmra.mxu0 %v950
    %v1071 = vpop.f32.mrf.mxu0
    %v1072 = vadd.f32 %v997, %v1071
    %v1073 = vpop.f32.mrf.mxu0
    %v1074 = vadd.f32 %v997, %v1073
    %1075 = vmatmul.bf16.gmra.mxu0 %v951
    %v1076 = vpop.f32.mrf.mxu0
    %v1077 = vadd.f32 %v997, %v1076
    %v1078 = vpop.f32.mrf.mxu0
    %v1079 = vadd.f32 %v997, %v1078
    %1080 = vmatmul.bf16.gmra.mxu0 %v952
    %v1081 = vpop.f32.mrf.mxu0
    %v1082 = vadd.f32 %v997, %v1081
    %v1083 = vpop.f32.mrf.mxu0
    %v1084 = vadd.f32 %v997, %v1083
    %1085 = vmatmul.bf16.gmra.mxu0 %v953
    %v1086 = vpop.f32.mrf.mxu0
    %v1087 = vadd.f32 %v997, %v1086
    %v1088 = vpop.f32.mrf.mxu0
    %v1089 = vadd.f32 %v997, %v1088
    %1090 = vmatmul.bf16.gmra.mxu0 %v954
    %v1091 = vpop.f32.mrf.mxu0
    %v1092 = vadd.f32 %v997, %v1091
    %v1093 = vpop.f32.mrf.mxu0
    %v1094 = vadd.f32 %v997, %v1093
    %1095 = vmatmul.bf16.gmra.mxu0 %v955
    %v1096 = vpop.f32.mrf.mxu0
    %v1097 = vadd.f32 %v997, %v1096
    %v1098 = vpop.f32.mrf.mxu0
    %v1099 = vadd.f32 %v997, %v1098
    %1100 = vmatmul.bf16.gmra.mxu0 %v956
    %v1101 = vpop.f32.mrf.mxu0
    %v1102 = vadd.f32 %v997, %v1101
    %v1103 = vpop.f32.mrf.mxu0
    %v1104 = vadd.f32 %v997, %v1103
    %1105 = vmatmul.bf16.gmra.mxu0 %v957
    %v1106 = vpop.f32.mrf.mxu0
    %v1107 = vadd.f32 %v997, %v1106
    %v1108 = vpop.f32.mrf.mxu0
    %v1109 = vadd.f32 %v997, %v1108
    %1110 = vmatmul.bf16.gmra.mxu0 %v958
    %v1111 = vpop.f32.mrf.mxu0
    %v1112 = vadd.f32 %v997, %v1111
    %v1113 = vpop.f32.mrf.mxu0
    %v1114 = vadd.f32 %v997, %v1113
    %1115 = vmatmul.bf16.gmra.mxu0 %v959
    %v1116 = vpop.f32.mrf.mxu0
    %v1117 = vadd.f32 %v997, %v1116
    %v1118 = vpop.f32.mrf.mxu0
    %v1119 = vadd.f32 %v997, %v1118
    %1120 = vmatmul.bf16.gmra.mxu0 %v960
    %v1121 = vpop.f32.mrf.mxu0
    %v1122 = vadd.f32 %v997, %v1121
    %v1123 = vpop.f32.mrf.mxu0
    %v1124 = vadd.f32 %v997, %v1123
    %1125 = vmatmul.bf16.gmra.mxu0 %v961
    %v1126 = vpop.f32.mrf.mxu0
    %v1127 = vadd.f32 %v997, %v1126
    %v1128 = vpop.f32.mrf.mxu0
    %v1129 = vadd.f32 %v997, %v1128
    %1130 = vmatmul.bf16.gmra.mxu0 %v962
    %v1131 = vpop.f32.mrf.mxu0
    %v1132 = vadd.f32 %v997, %v1131
    %v1133 = vpop.f32.mrf.mxu0
    %v1134 = vadd.f32 %v997, %v1133
    %1135 = vmatmul.bf16.gmra.mxu0 %v963
    %v1136 = vpop.f32.mrf.mxu0
    %v1137 = vadd.f32 %v997, %v1136
    %v1138 = vpop.f32.mrf.mxu0
    %v1139 = vadd.f32 %v997, %v1138
    %1140 = vmatmul.bf16.gmra.mxu0 %v964
    %v1141 = vpop.f32.mrf.mxu0
    %v1142 = vadd.f32 %v997, %v1141
    %v1143 = vpop.f32.mrf.mxu0
    %v1144 = vadd.f32 %v997, %v1143
    %1145 = vmatmul.bf16.gmra.mxu0 %v965
    %v1146 = vpop.f32.mrf.mxu0
    %v1147 = vadd.f32 %v997, %v1146
    %v1148 = vpop.f32.mrf.mxu0
    %v1149 = vadd.f32 %v997, %v1148
    %1150 = vmatmul.bf16.gmra.mxu0 %v966
    %v1151 = vpop.f32.mrf.mxu0
    %v1152 = vadd.f32 %v997, %v1151
    %v1153 = vpop.f32.mrf.mxu0
    %v1154 = vadd.f32 %v997, %v1153
    %1155 = vmatmul.bf16.gmra.mxu0 %v967
    %v1156 = vpop.f32.mrf.mxu0
    %v1157 = vadd.f32 %v997, %v1156
    %v1158 = vpop.f32.mrf.mxu0
    %v1159 = vadd.f32 %v997, %v1158
    %1160 = vmatmul.bf16.gmra.mxu0 %v968
    %v1161 = vpop.f32.mrf.mxu0
    %v1162 = vadd.f32 %v997, %v1161
    %v1163 = vpop.f32.mrf.mxu0
    %v1164 = vadd.f32 %v997, %v1163
    %1165 = vmatmul.bf16.gmra.mxu0 %v969
    %v1166 = vpop.f32.mrf.mxu0
    %v1167 = vadd.f32 %v997, %v1166
    %v1168 = vpop.f32.mrf.mxu0
    %v1169 = vadd.f32 %v997, %v1168
    %1170 = vmatmul.bf16.gmra.mxu0 %v970
    %v1171 = vpop.f32.mrf.mxu0
    %v1172 = vadd.f32 %v997, %v1171
    %v1173 = vpop.f32.mrf.mxu0
    %v1174 = vadd.f32 %v997, %v1173
    %1175 = vmatmul.bf16.gmra.mxu0 %v971
    %v1176 = vpop.f32.mrf.mxu0
    %v1177 = vadd.f32 %v997, %v1176
    %v1178 = vpop.f32.mrf.mxu0
    %v1179 = vadd.f32 %v997, %v1178
    %1180 = vmatmul.bf16.gmra.mxu0 %v972
    %v1181 = vpop.f32.mrf.mxu0
    %v1182 = vadd.f32 %v997, %v1181
    %v1183 = vpop.f32.mrf.mxu0
    %v1184 = vadd.f32 %v997, %v1183
    %1185 = vmatmul.bf16.gmra.mxu0 %v973
    %v1186 = vpop.f32.mrf.mxu0
    %v1187 = vadd.f32 %v997, %v1186
    %v1188 = vpop.f32.mrf.mxu0
    %v1189 = vadd.f32 %v997, %v1188
    %1190 = vmatmul.bf16.gmra.mxu0 %v974
    %v1191 = vpop.f32.mrf.mxu0
    %v1192 = vadd.f32 %v997, %v1191
    %v1193 = vpop.f32.mrf.mxu0
    %v1194 = vadd.f32 %v997, %v1193
    %1195 = vmatmul.bf16.gmra.mxu0 %v975
    %v1196 = vpop.f32.mrf.mxu0
    %v1197 = vadd.f32 %v997, %v1196
    %v1198 = vpop.f32.mrf.mxu0
    %v1199 = vadd.f32 %v997, %v1198
    %1200 = vmatmul.bf16.gmra.mxu0 %v976
    %v1201 = vpop.f32.mrf.mxu0
    %v1202 = vadd.f32 %v997, %v1201
    %v1203 = vpop.f32.mrf.mxu0
    %v1204 = vadd.f32 %v997, %v1203
    %1205 = vmatmul.bf16.gmra.mxu0 %v977
    %v1206 = vpop.f32.mrf.mxu0
    %v1207 = vadd.f32 %v997, %v1206
    %v1208 = vpop.f32.mrf.mxu0
    %v1209 = vadd.f32 %v997, %v1208
    %1210 = vmatmul.bf16.gmra.mxu0 %v978
    %v1211 = vpop.f32.mrf.mxu0
    %v1212 = vadd.f32 %v997, %v1211
    %v1213 = vpop.f32.mrf.mxu0
    %v1214 = vadd.f32 %v997, %v1213
    %1215 = vdwg.mxu0
    %v1216 = vmax.f32 %v1057, 0.0
    %v1217 = vmax.f32 %v1059, 0.0
    %v1218 = vmax.f32 %v1062, 0.0
    %v1219 = vmax.f32 %v1064, 0.0
    %v1220 = vmax.f32 %v1067, 0.0
    %v1221 = vmax.f32 %v1069, 0.0
    %v1222 = vmax.f32 %v1072, 0.0
    %v1223 = vmax.f32 %v1074, 0.0
    %v1224 = vmax.f32 %v1077, 0.0
    %v1225 = vmax.f32 %v1079, 0.0
    %v1226 = vmax.f32 %v1082, 0.0
    %v1227 = vmax.f32 %v1084, 0.0
    %v1228 = vmax.f32 %v1087, 0.0
    %v1229 = vmax.f32 %v1089, 0.0
    %v1230 = vmax.f32 %v1092, 0.0
    %v1231 = vmax.f32 %v1094, 0.0
    %v1232 = vmax.f32 %v1097, 0.0
    %v1233 = vmax.f32 %v1099, 0.0
    %v1234 = vmax.f32 %v1102, 0.0
    %v1235 = vmax.f32 %v1104, 0.0
    %v1236 = vmax.f32 %v1107, 0.0
    %v1237 = vmax.f32 %v1109, 0.0
    %v1238 = vmax.f32 %v1112, 0.0
    %v1239 = vmax.f32 %v1114, 0.0
    %v1240 = vmax.f32 %v1117, 0.0
    %v1241 = vmax.f32 %v1119, 0.0
    %v1242 = vmax.f32 %v1122, 0.0
    %v1243 = vmax.f32 %v1124, 0.0
    %v1244 = vmax.f32 %v1127, 0.0
    %v1245 = vmax.f32 %v1129, 0.0
    %v1246 = vmax.f32 %v1132, 0.0
    %v1247 = vmax.f32 %v1134, 0.0
    %v1248 = vmax.f32 %v1137, 0.0
    %v1249 = vmax.f32 %v1139, 0.0
    %v1250 = vmax.f32 %v1142, 0.0
    %v1251 = vmax.f32 %v1144, 0.0
    %v1252 = vmax.f32 %v1147, 0.0
    %v1253 = vmax.f32 %v1149, 0.0
    %v1254 = vmax.f32 %v1152, 0.0
    %v1255 = vmax.f32 %v1154, 0.0
    %v1256 = vmax.f32 %v1157, 0.0
    %v1257 = vmax.f32 %v1159, 0.0
    %v1258 = vmax.f32 %v1162, 0.0
    %v1259 = vmax.f32 %v1164, 0.0
    %v1260 = vmax.f32 %v1167, 0.0
    %v1261 = vmax.f32 %v1169, 0.0
    %v1262 = vmax.f32 %v1172, 0.0
    %v1263 = vmax.f32 %v1174, 0.0
    %v1264 = vmax.f32 %v1177, 0.0
    %v1265 = vmax.f32 %v1179, 0.0
    %v1266 = vmax.f32 %v1182, 0.0
    %v1267 = vmax.f32 %v1184, 0.0
    %v1268 = vmax.f32 %v1187, 0.0
    %v1269 = vmax.f32 %v1189, 0.0
    %v1270 = vmax.f32 %v1192, 0.0
    %v1271 = vmax.f32 %v1194, 0.0
    %v1272 = vmax.f32 %v1197, 0.0
    %v1273 = vmax.f32 %v1199, 0.0
    %v1274 = vmax.f32 %v1202, 0.0
    %v1275 = vmax.f32 %v1204, 0.0
    %v1276 = vmax.f32 %v1207, 0.0
    %v1277 = vmax.f32 %v1209, 0.0
    %v1278 = vmax.f32 %v1212, 0.0
    %v1279 = vmax.f32 %v1214, 0.0
    %v1280 = vpack.c.bf16 %v1217, %v1216
    %v1281 = vpack.c.bf16 %v1219, %v1218
    %v1282 = vpack.c.bf16 %v1221, %v1220
    %v1283 = vpack.c.bf16 %v1223, %v1222
    %v1284 = vpack.c.bf16 %v1225, %v1224
    %v1285 = vpack.c.bf16 %v1227, %v1226
    %v1286 = vpack.c.bf16 %v1229, %v1228
    %v1287 = vpack.c.bf16 %v1231, %v1230
    %v1288 = vpack.c.bf16 %v1233, %v1232
    %v1289 = vpack.c.bf16 %v1235, %v1234
    %v1290 = vpack.c.bf16 %v1237, %v1236
    %v1291 = vpack.c.bf16 %v1239, %v1238
    %v1292 = vpack.c.bf16 %v1241, %v1240
    %v1293 = vpack.c.bf16 %v1243, %v1242
    %v1294 = vpack.c.bf16 %v1245, %v1244
    %v1295 = vpack.c.bf16 %v1247, %v1246
    %v1296 = vpack.c.bf16 %v1249, %v1248
    %v1297 = vpack.c.bf16 %v1251, %v1250
    %v1298 = vpack.c.bf16 %v1253, %v1252
    %v1299 = vpack.c.bf16 %v1255, %v1254
    %v1300 = vpack.c.bf16 %v1257, %v1256
    %v1301 = vpack.c.bf16 %v1259, %v1258
    %v1302 = vpack.c.bf16 %v1261, %v1260
    %v1303 = vpack.c.bf16 %v1263, %v1262
    %v1304 = vpack.c.bf16 %v1265, %v1264
    %v1305 = vpack.c.bf16 %v1267, %v1266
    %v1306 = vpack.c.bf16 %v1269, %v1268
    %v1307 = vpack.c.bf16 %v1271, %v1270
    %v1308 = vpack.c.bf16 %v1273, %v1272
    %v1309 = vpack.c.bf16 %v1275, %v1274
    %v1310 = vpack.c.bf16 %v1277, %v1276
    %v1311 = vpack.c.bf16 %v1279, %v1278
    %v1312 = vld [vmem:[%s7] sm:$0xf]
    %v1313 = vld [vmem:[%s7 + $0x4] sm:$0xf]
    %v1314 = vld [vmem:[%s7 + $0x8] sm:$0xf]
    %v1315 = vld [vmem:[%s7 + $0xc] sm:$0xf]
    %v1316 = vld [vmem:[%s7 + $0x10] sm:$0xf]
    %v1317 = vld [vmem:[%s7 + $0x14] sm:$0xf]
    %v1318 = vld [vmem:[%s7 + $0x18] sm:$0xf]
    %v1319 = vld [vmem:[%s7 + $0x1c] sm:$0xf]
    %v1320 = vld [vmem:[%s7 + $0x20] sm:$0xf]
    %v1321 = vld [vmem:[%s7 + $0x24] sm:$0xf]
    %v1322 = vld [vmem:[%s7 + $0x28] sm:$0xf]
    %v1323 = vld [vmem:[%s7 + $0x2c] sm:$0xf]
    %v1324 = vld [vmem:[%s7 + $0x30] sm:$0xf]
    %v1325 = vld [vmem:[%s7 + $0x34] sm:$0xf]
    %v1326 = vld [vmem:[%s7 + $0x38] sm:$0xf]
    %v1327 = vld [vmem:[%s7 + $0x3c] sm:$0xf]
    %v1328 = vld [vmem:[%s8] sm:$0x1]
    %v1330 = vperm.slane %v1328, 0
    %v1348 = vunpack.c.l.b16 %v1312
    %v1349 = vunpack.c.l.b16 %v1313
    %v1350 = vunpack.c.l.b16 %v1314
    %v1351 = vunpack.c.l.b16 %v1315
    %v1352 = vunpack.c.l.b16 %v1316
    %v1353 = vunpack.c.l.b16 %v1317
    %v1354 = vunpack.c.l.b16 %v1318
    %v1355 = vunpack.c.l.b16 %v1319
    %v1356 = vunpack.c.l.b16 %v1320
    %v1357 = vunpack.c.l.b16 %v1321
    %v1358 = vunpack.c.l.b16 %v1322
    %v1359 = vunpack.c.l.b16 %v1323
    %v1360 = vunpack.c.l.b16 %v1324
    %v1361 = vunpack.c.l.b16 %v1325
    %v1362 = vunpack.c.l.b16 %v1326
    %v1363 = vunpack.c.l.b16 %v1327
    %v1364 = vpack.c.b16 %v1349, %v1348
    %v1365 = vpack.c.b16 %v1351, %v1350
    %v1366 = vpack.c.b16 %v1353, %v1352
    %v1367 = vpack.c.b16 %v1355, %v1354
    %v1368 = vpack.c.b16 %v1357, %v1356
    %v1369 = vpack.c.b16 %v1359, %v1358
    %v1370 = vpack.c.b16 %v1361, %v1360
    %v1371 = vpack.c.b16 %v1363, %v1362
    %1380 = vmatpush.bf16.msra.mxu0 %v1371
    %1381 = vmatpush.bf16.msra.mxu0 %v1370
    %1382 = vmatpush.bf16.msra.mxu0 %v1369
    %1383 = vmatpush.bf16.msra.mxu0 %v1368
    %1384 = vmatpush.bf16.msra.mxu0 %v1367
    %1385 = vmatpush.bf16.msra.mxu0 %v1366
    %1386 = vmatpush.bf16.msra.mxu0 %v1365
    %1387 = vmatpush.bf16.msra.mxu0 %v1364
    %1388 = vmatmul.bf16.gmra.mxu0 %v1280
    %v1389 = vpop.f32.mrf.mxu0
    %v1390 = vadd.f32 %v1330, %v1389
    %v1391 = vpop.f32.mrf.mxu0
    %v1392 = vadd.f32 %v1330, %v1391
    %1393 = vmatmul.bf16.gmra.mxu0 %v1281
    %v1394 = vpop.f32.mrf.mxu0
    %v1395 = vadd.f32 %v1330, %v1394
    %v1396 = vpop.f32.mrf.mxu0
    %v1397 = vadd.f32 %v1330, %v1396
    %1398 = vmatmul.bf16.gmra.mxu0 %v1282
    %v1399 = vpop.f32.mrf.mxu0
    %v1400 = vadd.f32 %v1330, %v1399
    %v1401 = vpop.f32.mrf.mxu0
    %v1402 = vadd.f32 %v1330, %v1401
    %1403 = vmatmul.bf16.gmra.mxu0 %v1283
    %v1404 = vpop.f32.mrf.mxu0
    %v1405 = vadd.f32 %v1330, %v1404
    %v1406 = vpop.f32.mrf.mxu0
    %v1407 = vadd.f32 %v1330, %v1406
    %1408 = vmatmul.bf16.gmra.mxu0 %v1284
    %v1409 = vpop.f32.mrf.mxu0
    %v1410 = vadd.f32 %v1330, %v1409
    %v1411 = vpop.f32.mrf.mxu0
    %v1412 = vadd.f32 %v1330, %v1411
    %1413 = vmatmul.bf16.gmra.mxu0 %v1285
    %v1414 = vpop.f32.mrf.mxu0
    %v1415 = vadd.f32 %v1330, %v1414
    %v1416 = vpop.f32.mrf.mxu0
    %v1417 = vadd.f32 %v1330, %v1416
    %1418 = vmatmul.bf16.gmra.mxu0 %v1286
    %v1419 = vpop.f32.mrf.mxu0
    %v1420 = vadd.f32 %v1330, %v1419
    %v1421 = vpop.f32.mrf.mxu0
    %v1422 = vadd.f32 %v1330, %v1421
    %1423 = vmatmul.bf16.gmra.mxu0 %v1287
    %v1424 = vpop.f32.mrf.mxu0
    %v1425 = vadd.f32 %v1330, %v1424
    %v1426 = vpop.f32.mrf.mxu0
    %v1427 = vadd.f32 %v1330, %v1426
    %1428 = vmatmul.bf16.gmra.mxu0 %v1288
    %v1429 = vpop.f32.mrf.mxu0
    %v1430 = vadd.f32 %v1330, %v1429
    %v1431 = vpop.f32.mrf.mxu0
    %v1432 = vadd.f32 %v1330, %v1431
    %1433 = vmatmul.bf16.gmra.mxu0 %v1289
    %v1434 = vpop.f32.mrf.mxu0
    %v1435 = vadd.f32 %v1330, %v1434
    %v1436 = vpop.f32.mrf.mxu0
    %v1437 = vadd.f32 %v1330, %v1436
    %1438 = vmatmul.bf16.gmra.mxu0 %v1290
    %v1439 = vpop.f32.mrf.mxu0
    %v1440 = vadd.f32 %v1330, %v1439
    %v1441 = vpop.f32.mrf.mxu0
    %v1442 = vadd.f32 %v1330, %v1441
    %1443 = vmatmul.bf16.gmra.mxu0 %v1291
    %v1444 = vpop.f32.mrf.mxu0
    %v1445 = vadd.f32 %v1330, %v1444
    %v1446 = vpop.f32.mrf.mxu0
    %v1447 = vadd.f32 %v1330, %v1446
    %1448 = vmatmul.bf16.gmra.mxu0 %v1292
    %v1449 = vpop.f32.mrf.mxu0
    %v1450 = vadd.f32 %v1330, %v1449
    %v1451 = vpop.f32.mrf.mxu0
    %v1452 = vadd.f32 %v1330, %v1451
    %1453 = vmatmul.bf16.gmra.mxu0 %v1293
    %v1454 = vpop.f32.mrf.mxu0
    %v1455 = vadd.f32 %v1330, %v1454
    %v1456 = vpop.f32.mrf.mxu0
    %v1457 = vadd.f32 %v1330, %v1456
    %1458 = vmatmul.bf16.gmra.mxu0 %v1294
    %v1459 = vpop.f32.mrf.mxu0
    %v1460 = vadd.f32 %v1330, %v1459
    %v1461 = vpop.f32.mrf.mxu0
    %v1462 = vadd.f32 %v1330, %v1461
    %1463 = vmatmul.bf16.gmra.mxu0 %v1295
    %v1464 = vpop.f32.mrf.mxu0
    %v1465 = vadd.f32 %v1330, %v1464
    %v1466 = vpop.f32.mrf.mxu0
    %v1467 = vadd.f32 %v1330, %v1466
    %1468 = vmatmul.bf16.gmra.mxu0 %v1296
    %v1469 = vpop.f32.mrf.mxu0
    %v1470 = vadd.f32 %v1330, %v1469
    %v1471 = vpop.f32.mrf.mxu0
    %v1472 = vadd.f32 %v1330, %v1471
    %1473 = vmatmul.bf16.gmra.mxu0 %v1297
    %v1474 = vpop.f32.mrf.mxu0
    %v1475 = vadd.f32 %v1330, %v1474
    %v1476 = vpop.f32.mrf.mxu0
    %v1477 = vadd.f32 %v1330, %v1476
    %1478 = vmatmul.bf16.gmra.mxu0 %v1298
    %v1479 = vpop.f32.mrf.mxu0
    %v1480 = vadd.f32 %v1330, %v1479
    %v1481 = vpop.f32.mrf.mxu0
    %v1482 = vadd.f32 %v1330, %v1481
    %1483 = vmatmul.bf16.gmra.mxu0 %v1299
    %v1484 = vpop.f32.mrf.mxu0
    %v1485 = vadd.f32 %v1330, %v1484
    %v1486 = vpop.f32.mrf.mxu0
    %v1487 = vadd.f32 %v1330, %v1486
    %1488 = vmatmul.bf16.gmra.mxu0 %v1300
    %v1489 = vpop.f32.mrf.mxu0
    %v1490 = vadd.f32 %v1330, %v1489
    %v1491 = vpop.f32.mrf.mxu0
    %v1492 = vadd.f32 %v1330, %v1491
    %1493 = vmatmul.bf16.gmra.mxu0 %v1301
    %v1494 = vpop.f32.mrf.mxu0
    %v1495 = vadd.f32 %v1330, %v1494
    %v1496 = vpop.f32.mrf.mxu0
    %v1497 = vadd.f32 %v1330, %v1496
    %1498 = vmatmul.bf16.gmra.mxu0 %v1302
    %v1499 = vpop.f32.mrf.mxu0
    %v1500 = vadd.f32 %v1330, %v1499
    %v1501 = vpop.f32.mrf.mxu0
    %v1502 = vadd.f32 %v1330, %v1501
    %1503 = vmatmul.bf16.gmra.mxu0 %v1303
    %v1504 = vpop.f32.mrf.mxu0
    %v1505 = vadd.f32 %v1330, %v1504
    %v1506 = vpop.f32.mrf.mxu0
    %v1507 = vadd.f32 %v1330, %v1506
    %1508 = vmatmul.bf16.gmra.mxu0 %v1304
    %v1509 = vpop.f32.mrf.mxu0
    %v1510 = vadd.f32 %v1330, %v1509
    %v1511 = vpop.f32.mrf.mxu0
    %v1512 = vadd.f32 %v1330, %v1511
    %1513 = vmatmul.bf16.gmra.mxu0 %v1305
    %v1514 = vpop.f32.mrf.mxu0
    %v1515 = vadd.f32 %v1330, %v1514
    %v1516 = vpop.f32.mrf.mxu0
    %v1517 = vadd.f32 %v1330, %v1516
    %1518 = vmatmul.bf16.gmra.mxu0 %v1306
    %v1519 = vpop.f32.mrf.mxu0
    %v1520 = vadd.f32 %v1330, %v1519
    %v1521 = vpop.f32.mrf.mxu0
    %v1522 = vadd.f32 %v1330, %v1521
    %1523 = vmatmul.bf16.gmra.mxu0 %v1307
    %v1524 = vpop.f32.mrf.mxu0
    %v1525 = vadd.f32 %v1330, %v1524
    %v1526 = vpop.f32.mrf.mxu0
    %v1527 = vadd.f32 %v1330, %v1526
    %1528 = vmatmul.bf16.gmra.mxu0 %v1308
    %v1529 = vpop.f32.mrf.mxu0
    %v1530 = vadd.f32 %v1330, %v1529
    %v1531 = vpop.f32.mrf.mxu0
    %v1532 = vadd.f32 %v1330, %v1531
    %1533 = vmatmul.bf16.gmra.mxu0 %v1309
    %v1534 = vpop.f32.mrf.mxu0
    %v1535 = vadd.f32 %v1330, %v1534
    %v1536 = vpop.f32.mrf.mxu0
    %v1537 = vadd.f32 %v1330, %v1536
    %1538 = vmatmul.bf16.gmra.mxu0 %v1310
    %v1539 = vpop.f32.mrf.mxu0
    %v1540 = vadd.f32 %v1330, %v1539
    %v1541 = vpop.f32.mrf.mxu0
    %v1542 = vadd.f32 %v1330, %v1541
    %1543 = vmatmul.bf16.gmra.mxu0 %v1311
    %v1544 = vpop.f32.mrf.mxu0
    %v1545 = vadd.f32 %v1330, %v1544
    %v1546 = vpop.f32.mrf.mxu0
    %v1547 = vadd.f32 %v1330, %v1546
    %1548 = vdwg.mxu0
    %v1549 = vmax.f32 %v1390, 0.0
    %v1550 = vmax.f32 %v1392, 0.0
    %v1551 = vmax.f32 %v1395, 0.0
    %v1552 = vmax.f32 %v1397, 0.0
    %v1553 = vmax.f32 %v1400, 0.0
    %v1554 = vmax.f32 %v1402, 0.0
    %v1555 = vmax.f32 %v1405, 0.0
    %v1556 = vmax.f32 %v1407, 0.0
    %v1557 = vmax.f32 %v1410, 0.0
    %v1558 = vmax.f32 %v1412, 0.0
    %v1559 = vmax.f32 %v1415, 0.0
    %v1560 = vmax.f32 %v1417, 0.0
    %v1561 = vmax.f32 %v1420, 0.0
    %v1562 = vmax.f32 %v1422, 0.0
    %v1563 = vmax.f32 %v1425, 0.0
    %v1564 = vmax.f32 %v1427, 0.0
    %v1565 = vmax.f32 %v1430, 0.0
    %v1566 = vmax.f32 %v1432, 0.0
    %v1567 = vmax.f32 %v1435, 0.0
    %v1568 = vmax.f32 %v1437, 0.0
    %v1569 = vmax.f32 %v1440, 0.0
    %v1570 = vmax.f32 %v1442, 0.0
    %v1571 = vmax.f32 %v1445, 0.0
    %v1572 = vmax.f32 %v1447, 0.0
    %v1573 = vmax.f32 %v1450, 0.0
    %v1574 = vmax.f32 %v1452, 0.0
    %v1575 = vmax.f32 %v1455, 0.0
    %v1576 = vmax.f32 %v1457, 0.0
    %v1577 = vmax.f32 %v1460, 0.0
    %v1578 = vmax.f32 %v1462, 0.0
    %v1579 = vmax.f32 %v1465, 0.0
    %v1580 = vmax.f32 %v1467, 0.0
    %v1581 = vmax.f32 %v1470, 0.0
    %v1582 = vmax.f32 %v1472, 0.0
    %v1583 = vmax.f32 %v1475, 0.0
    %v1584 = vmax.f32 %v1477, 0.0
    %v1585 = vmax.f32 %v1480, 0.0
    %v1586 = vmax.f32 %v1482, 0.0
    %v1587 = vmax.f32 %v1485, 0.0
    %v1588 = vmax.f32 %v1487, 0.0
    %v1589 = vmax.f32 %v1490, 0.0
    %v1590 = vmax.f32 %v1492, 0.0
    %v1591 = vmax.f32 %v1495, 0.0
    %v1592 = vmax.f32 %v1497, 0.0
    %v1593 = vmax.f32 %v1500, 0.0
    %v1594 = vmax.f32 %v1502, 0.0
    %v1595 = vmax.f32 %v1505, 0.0
    %v1596 = vmax.f32 %v1507, 0.0
    %v1597 = vmax.f32 %v1510, 0.0
    %v1598 = vmax.f32 %v1512, 0.0
    %v1599 = vmax.f32 %v1515, 0.0
    %v1600 = vmax.f32 %v1517, 0.0
    %v1601 = vmax.f32 %v1520, 0.0
    %v1602 = vmax.f32 %v1522, 0.0
    %v1603 = vmax.f32 %v1525, 0.0
    %v1604 = vmax.f32 %v1527, 0.0
    %v1605 = vmax.f32 %v1530, 0.0
    %v1606 = vmax.f32 %v1532, 0.0
    %v1607 = vmax.f32 %v1535, 0.0
    %v1608 = vmax.f32 %v1537, 0.0
    %v1609 = vmax.f32 %v1540, 0.0
    %v1610 = vmax.f32 %v1542, 0.0
    %v1611 = vmax.f32 %v1545, 0.0
    %v1612 = vmax.f32 %v1547, 0.0
    %v1613 = vpack.c.bf16 %v1550, %v1549
    %v1614 = vpack.c.bf16 %v1552, %v1551
    %v1615 = vpack.c.bf16 %v1554, %v1553
    %v1616 = vpack.c.bf16 %v1556, %v1555
    %v1617 = vpack.c.bf16 %v1558, %v1557
    %v1618 = vpack.c.bf16 %v1560, %v1559
    %v1619 = vpack.c.bf16 %v1562, %v1561
    %v1620 = vpack.c.bf16 %v1564, %v1563
    %v1621 = vpack.c.bf16 %v1566, %v1565
    %v1622 = vpack.c.bf16 %v1568, %v1567
    %v1623 = vpack.c.bf16 %v1570, %v1569
    %v1624 = vpack.c.bf16 %v1572, %v1571
    %v1625 = vpack.c.bf16 %v1574, %v1573
    %v1626 = vpack.c.bf16 %v1576, %v1575
    %v1627 = vpack.c.bf16 %v1578, %v1577
    %v1628 = vpack.c.bf16 %v1580, %v1579
    %v1629 = vpack.c.bf16 %v1582, %v1581
    %v1630 = vpack.c.bf16 %v1584, %v1583
    %v1631 = vpack.c.bf16 %v1586, %v1585
    %v1632 = vpack.c.bf16 %v1588, %v1587
    %v1633 = vpack.c.bf16 %v1590, %v1589
    %v1634 = vpack.c.bf16 %v1592, %v1591
    %v1635 = vpack.c.bf16 %v1594, %v1593
    %v1636 = vpack.c.bf16 %v1596, %v1595
    %v1637 = vpack.c.bf16 %v1598, %v1597
    %v1638 = vpack.c.bf16 %v1600, %v1599
    %v1639 = vpack.c.bf16 %v1602, %v1601
    %v1640 = vpack.c.bf16 %v1604, %v1603
    %v1641 = vpack.c.bf16 %v1606, %v1605
    %v1642 = vpack.c.bf16 %v1608, %v1607
    %v1643 = vpack.c.bf16 %v1610, %v1609
    %v1644 = vpack.c.bf16 %v1612, %v1611
    %v1645 = vld [vmem:[%s9] sm:$0xf]
    %v1646 = vld [vmem:[%s9 + $0x4] sm:$0xf]
    %v1647 = vld [vmem:[%s9 + $0x8] sm:$0xf]
    %v1648 = vld [vmem:[%s9 + $0xc] sm:$0xf]
    %v1649 = vld [vmem:[%s9 + $0x10] sm:$0xf]
    %v1650 = vld [vmem:[%s9 + $0x14] sm:$0xf]
    %v1651 = vld [vmem:[%s9 + $0x18] sm:$0xf]
    %v1652 = vld [vmem:[%s9 + $0x1c] sm:$0xf]
    %v1653 = vld [vmem:[%s9 + $0x20] sm:$0xf]
    %v1654 = vld [vmem:[%s9 + $0x24] sm:$0xf]
    %v1655 = vld [vmem:[%s9 + $0x28] sm:$0xf]
    %v1656 = vld [vmem:[%s9 + $0x2c] sm:$0xf]
    %v1657 = vld [vmem:[%s9 + $0x30] sm:$0xf]
    %v1658 = vld [vmem:[%s9 + $0x34] sm:$0xf]
    %v1659 = vld [vmem:[%s9 + $0x38] sm:$0xf]
    %v1660 = vld [vmem:[%s9 + $0x3c] sm:$0xf]
    %v1661 = vld [vmem:[%s10] sm:$0x1]
    %v1663 = vperm.slane %v1661, 0
    %v1681 = vunpack.c.l.b16 %v1645
    %v1682 = vunpack.c.l.b16 %v1646
    %v1683 = vunpack.c.l.b16 %v1647
    %v1684 = vunpack.c.l.b16 %v1648
    %v1685 = vunpack.c.l.b16 %v1649
    %v1686 = vunpack.c.l.b16 %v1650
    %v1687 = vunpack.c.l.b16 %v1651
    %v1688 = vunpack.c.l.b16 %v1652
    %v1689 = vunpack.c.l.b16 %v1653
    %v1690 = vunpack.c.l.b16 %v1654
    %v1691 = vunpack.c.l.b16 %v1655
    %v1692 = vunpack.c.l.b16 %v1656
    %v1693 = vunpack.c.l.b16 %v1657
    %v1694 = vunpack.c.l.b16 %v1658
    %v1695 = vunpack.c.l.b16 %v1659
    %v1696 = vunpack.c.l.b16 %v1660
    %v1697 = vpack.c.b16 %v1682, %v1681
    %v1698 = vpack.c.b16 %v1684, %v1683
    %v1699 = vpack.c.b16 %v1686, %v1685
    %v1700 = vpack.c.b16 %v1688, %v1687
    %v1701 = vpack.c.b16 %v1690, %v1689
    %v1702 = vpack.c.b16 %v1692, %v1691
    %v1703 = vpack.c.b16 %v1694, %v1693
    %v1704 = vpack.c.b16 %v1696, %v1695
    %1713 = vmatpush.bf16.msra.mxu0 %v1704
    %1714 = vmatpush.bf16.msra.mxu0 %v1703
    %1715 = vmatpush.bf16.msra.mxu0 %v1702
    %1716 = vmatpush.bf16.msra.mxu0 %v1701
    %1717 = vmatpush.bf16.msra.mxu0 %v1700
    %1718 = vmatpush.bf16.msra.mxu0 %v1699
    %1719 = vmatpush.bf16.msra.mxu0 %v1698
    %1720 = vmatpush.bf16.msra.mxu0 %v1697
    %1721 = vmatmul.bf16.gmra.mxu0 %v1613
    %v1722 = vpop.f32.mrf.mxu0
    %v1723 = vadd.f32 %v1663, %v1722
    %v1724 = vpop.f32.mrf.mxu0
    %v1725 = vadd.f32 %v1663, %v1724
    %1726 = vmatmul.bf16.gmra.mxu0 %v1614
    %v1727 = vpop.f32.mrf.mxu0
    %v1728 = vadd.f32 %v1663, %v1727
    %v1729 = vpop.f32.mrf.mxu0
    %v1730 = vadd.f32 %v1663, %v1729
    %1731 = vmatmul.bf16.gmra.mxu0 %v1615
    %v1732 = vpop.f32.mrf.mxu0
    %v1733 = vadd.f32 %v1663, %v1732
    %v1734 = vpop.f32.mrf.mxu0
    %v1735 = vadd.f32 %v1663, %v1734
    %1736 = vmatmul.bf16.gmra.mxu0 %v1616
    %v1737 = vpop.f32.mrf.mxu0
    %v1738 = vadd.f32 %v1663, %v1737
    %v1739 = vpop.f32.mrf.mxu0
    %v1740 = vadd.f32 %v1663, %v1739
    %1741 = vmatmul.bf16.gmra.mxu0 %v1617
    %v1742 = vpop.f32.mrf.mxu0
    %v1743 = vadd.f32 %v1663, %v1742
    %v1744 = vpop.f32.mrf.mxu0
    %v1745 = vadd.f32 %v1663, %v1744
    %1746 = vmatmul.bf16.gmra.mxu0 %v1618
    %v1747 = vpop.f32.mrf.mxu0
    %v1748 = vadd.f32 %v1663, %v1747
    %v1749 = vpop.f32.mrf.mxu0
    %v1750 = vadd.f32 %v1663, %v1749
    %1751 = vmatmul.bf16.gmra.mxu0 %v1619
    %v1752 = vpop.f32.mrf.mxu0
    %v1753 = vadd.f32 %v1663, %v1752
    %v1754 = vpop.f32.mrf.mxu0
    %v1755 = vadd.f32 %v1663, %v1754
    %1756 = vmatmul.bf16.gmra.mxu0 %v1620
    %v1757 = vpop.f32.mrf.mxu0
    %v1758 = vadd.f32 %v1663, %v1757
    %v1759 = vpop.f32.mrf.mxu0
    %v1760 = vadd.f32 %v1663, %v1759
    %1761 = vmatmul.bf16.gmra.mxu0 %v1621
    %v1762 = vpop.f32.mrf.mxu0
    %v1763 = vadd.f32 %v1663, %v1762
    %v1764 = vpop.f32.mrf.mxu0
    %v1765 = vadd.f32 %v1663, %v1764
    %1766 = vmatmul.bf16.gmra.mxu0 %v1622
    %v1767 = vpop.f32.mrf.mxu0
    %v1768 = vadd.f32 %v1663, %v1767
    %v1769 = vpop.f32.mrf.mxu0
    %v1770 = vadd.f32 %v1663, %v1769
    %1771 = vmatmul.bf16.gmra.mxu0 %v1623
    %v1772 = vpop.f32.mrf.mxu0
    %v1773 = vadd.f32 %v1663, %v1772
    %v1774 = vpop.f32.mrf.mxu0
    %v1775 = vadd.f32 %v1663, %v1774
    %1776 = vmatmul.bf16.gmra.mxu0 %v1624
    %v1777 = vpop.f32.mrf.mxu0
    %v1778 = vadd.f32 %v1663, %v1777
    %v1779 = vpop.f32.mrf.mxu0
    %v1780 = vadd.f32 %v1663, %v1779
    %1781 = vmatmul.bf16.gmra.mxu0 %v1625
    %v1782 = vpop.f32.mrf.mxu0
    %v1783 = vadd.f32 %v1663, %v1782
    %v1784 = vpop.f32.mrf.mxu0
    %v1785 = vadd.f32 %v1663, %v1784
    %1786 = vmatmul.bf16.gmra.mxu0 %v1626
    %v1787 = vpop.f32.mrf.mxu0
    %v1788 = vadd.f32 %v1663, %v1787
    %v1789 = vpop.f32.mrf.mxu0
    %v1790 = vadd.f32 %v1663, %v1789
    %1791 = vmatmul.bf16.gmra.mxu0 %v1627
    %v1792 = vpop.f32.mrf.mxu0
    %v1793 = vadd.f32 %v1663, %v1792
    %v1794 = vpop.f32.mrf.mxu0
    %v1795 = vadd.f32 %v1663, %v1794
    %1796 = vmatmul.bf16.gmra.mxu0 %v1628
    %v1797 = vpop.f32.mrf.mxu0
    %v1798 = vadd.f32 %v1663, %v1797
    %v1799 = vpop.f32.mrf.mxu0
    %v1800 = vadd.f32 %v1663, %v1799
    %1801 = vmatmul.bf16.gmra.mxu0 %v1629
    %v1802 = vpop.f32.mrf.mxu0
    %v1803 = vadd.f32 %v1663, %v1802
    %v1804 = vpop.f32.mrf.mxu0
    %v1805 = vadd.f32 %v1663, %v1804
    %1806 = vmatmul.bf16.gmra.mxu0 %v1630
    %v1807 = vpop.f32.mrf.mxu0
    %v1808 = vadd.f32 %v1663, %v1807
    %v1809 = vpop.f32.mrf.mxu0
    %v1810 = vadd.f32 %v1663, %v1809
    %1811 = vmatmul.bf16.gmra.mxu0 %v1631
    %v1812 = vpop.f32.mrf.mxu0
    %v1813 = vadd.f32 %v1663, %v1812
    %v1814 = vpop.f32.mrf.mxu0
    %v1815 = vadd.f32 %v1663, %v1814
    %1816 = vmatmul.bf16.gmra.mxu0 %v1632
    %v1817 = vpop.f32.mrf.mxu0
    %v1818 = vadd.f32 %v1663, %v1817
    %v1819 = vpop.f32.mrf.mxu0
    %v1820 = vadd.f32 %v1663, %v1819
    %1821 = vmatmul.bf16.gmra.mxu0 %v1633
    %v1822 = vpop.f32.mrf.mxu0
    %v1823 = vadd.f32 %v1663, %v1822
    %v1824 = vpop.f32.mrf.mxu0
    %v1825 = vadd.f32 %v1663, %v1824
    %1826 = vmatmul.bf16.gmra.mxu0 %v1634
    %v1827 = vpop.f32.mrf.mxu0
    %v1828 = vadd.f32 %v1663, %v1827
    %v1829 = vpop.f32.mrf.mxu0
    %v1830 = vadd.f32 %v1663, %v1829
    %1831 = vmatmul.bf16.gmra.mxu0 %v1635
    %v1832 = vpop.f32.mrf.mxu0
    %v1833 = vadd.f32 %v1663, %v1832
    %v1834 = vpop.f32.mrf.mxu0
    %v1835 = vadd.f32 %v1663, %v1834
    %1836 = vmatmul.bf16.gmra.mxu0 %v1636
    %v1837 = vpop.f32.mrf.mxu0
    %v1838 = vadd.f32 %v1663, %v1837
    %v1839 = vpop.f32.mrf.mxu0
    %v1840 = vadd.f32 %v1663, %v1839
    %1841 = vmatmul.bf16.gmra.mxu0 %v1637
    %v1842 = vpop.f32.mrf.mxu0
    %v1843 = vadd.f32 %v1663, %v1842
    %v1844 = vpop.f32.mrf.mxu0
    %v1845 = vadd.f32 %v1663, %v1844
    %1846 = vmatmul.bf16.gmra.mxu0 %v1638
    %v1847 = vpop.f32.mrf.mxu0
    %v1848 = vadd.f32 %v1663, %v1847
    %v1849 = vpop.f32.mrf.mxu0
    %v1850 = vadd.f32 %v1663, %v1849
    %1851 = vmatmul.bf16.gmra.mxu0 %v1639
    %v1852 = vpop.f32.mrf.mxu0
    %v1853 = vadd.f32 %v1663, %v1852
    %v1854 = vpop.f32.mrf.mxu0
    %v1855 = vadd.f32 %v1663, %v1854
    %1856 = vmatmul.bf16.gmra.mxu0 %v1640
    %v1857 = vpop.f32.mrf.mxu0
    %v1858 = vadd.f32 %v1663, %v1857
    %v1859 = vpop.f32.mrf.mxu0
    %v1860 = vadd.f32 %v1663, %v1859
    %1861 = vmatmul.bf16.gmra.mxu0 %v1641
    %v1862 = vpop.f32.mrf.mxu0
    %v1863 = vadd.f32 %v1663, %v1862
    %v1864 = vpop.f32.mrf.mxu0
    %v1865 = vadd.f32 %v1663, %v1864
    %1866 = vmatmul.bf16.gmra.mxu0 %v1642
    %v1867 = vpop.f32.mrf.mxu0
    %v1868 = vadd.f32 %v1663, %v1867
    %v1869 = vpop.f32.mrf.mxu0
    %v1870 = vadd.f32 %v1663, %v1869
    %1871 = vmatmul.bf16.gmra.mxu0 %v1643
    %v1872 = vpop.f32.mrf.mxu0
    %v1873 = vadd.f32 %v1663, %v1872
    %v1874 = vpop.f32.mrf.mxu0
    %v1875 = vadd.f32 %v1663, %v1874
    %1876 = vmatmul.bf16.gmra.mxu0 %v1644
    %v1877 = vpop.f32.mrf.mxu0
    %v1878 = vadd.f32 %v1663, %v1877
    %v1879 = vpop.f32.mrf.mxu0
    %v1880 = vadd.f32 %v1663, %v1879
    %1881 = vdwg.mxu0
    %v1882 = vpack.c.bf16 %v1723, %v1723
    %v1883 = vpack.c.bf16 %v1725, %v1725
    %v1884 = vpack.c.bf16 %v1728, %v1728
    %v1885 = vpack.c.bf16 %v1730, %v1730
    %v1886 = vpack.c.bf16 %v1733, %v1733
    %v1887 = vpack.c.bf16 %v1735, %v1735
    %v1888 = vpack.c.bf16 %v1738, %v1738
    %v1889 = vpack.c.bf16 %v1740, %v1740
    %v1890 = vpack.c.bf16 %v1743, %v1743
    %v1891 = vpack.c.bf16 %v1745, %v1745
    %v1892 = vpack.c.bf16 %v1748, %v1748
    %v1893 = vpack.c.bf16 %v1750, %v1750
    %v1894 = vpack.c.bf16 %v1753, %v1753
    %v1895 = vpack.c.bf16 %v1755, %v1755
    %v1896 = vpack.c.bf16 %v1758, %v1758
    %v1897 = vpack.c.bf16 %v1760, %v1760
    %v1898 = vpack.c.bf16 %v1763, %v1763
    %v1899 = vpack.c.bf16 %v1765, %v1765
    %v1900 = vpack.c.bf16 %v1768, %v1768
    %v1901 = vpack.c.bf16 %v1770, %v1770
    %v1902 = vpack.c.bf16 %v1773, %v1773
    %v1903 = vpack.c.bf16 %v1775, %v1775
    %v1904 = vpack.c.bf16 %v1778, %v1778
    %v1905 = vpack.c.bf16 %v1780, %v1780
    %v1906 = vpack.c.bf16 %v1783, %v1783
    %v1907 = vpack.c.bf16 %v1785, %v1785
    %v1908 = vpack.c.bf16 %v1788, %v1788
    %v1909 = vpack.c.bf16 %v1790, %v1790
    %v1910 = vpack.c.bf16 %v1793, %v1793
    %v1911 = vpack.c.bf16 %v1795, %v1795
    %v1912 = vpack.c.bf16 %v1798, %v1798
    %v1913 = vpack.c.bf16 %v1800, %v1800
    %v1914 = vpack.c.bf16 %v1803, %v1803
    %v1915 = vpack.c.bf16 %v1805, %v1805
    %v1916 = vpack.c.bf16 %v1808, %v1808
    %v1917 = vpack.c.bf16 %v1810, %v1810
    %v1918 = vpack.c.bf16 %v1813, %v1813
    %v1919 = vpack.c.bf16 %v1815, %v1815
    %v1920 = vpack.c.bf16 %v1818, %v1818
    %v1921 = vpack.c.bf16 %v1820, %v1820
    %v1922 = vpack.c.bf16 %v1823, %v1823
    %v1923 = vpack.c.bf16 %v1825, %v1825
    %v1924 = vpack.c.bf16 %v1828, %v1828
    %v1925 = vpack.c.bf16 %v1830, %v1830
    %v1926 = vpack.c.bf16 %v1833, %v1833
    %v1927 = vpack.c.bf16 %v1835, %v1835
    %v1928 = vpack.c.bf16 %v1838, %v1838
    %v1929 = vpack.c.bf16 %v1840, %v1840
    %v1930 = vpack.c.bf16 %v1843, %v1843
    %v1931 = vpack.c.bf16 %v1845, %v1845
    %v1932 = vpack.c.bf16 %v1848, %v1848
    %v1933 = vpack.c.bf16 %v1850, %v1850
    %v1934 = vpack.c.bf16 %v1853, %v1853
    %v1935 = vpack.c.bf16 %v1855, %v1855
    %v1936 = vpack.c.bf16 %v1858, %v1858
    %v1937 = vpack.c.bf16 %v1860, %v1860
    %v1938 = vpack.c.bf16 %v1863, %v1863
    %v1939 = vpack.c.bf16 %v1865, %v1865
    %v1940 = vpack.c.bf16 %v1868, %v1868
    %v1941 = vpack.c.bf16 %v1870, %v1870
    %v1942 = vpack.c.bf16 %v1873, %v1873
    %v1943 = vpack.c.bf16 %v1875, %v1875
    %v1944 = vpack.c.bf16 %v1878, %v1878
    %v1945 = vpack.c.bf16 %v1880, %v1880
    %1946 = vst [vmem:[#allocation2] sm:$0xf] %v1882
    %1947 = vst [vmem:[#allocation2 + $0x4] sm:$0xf] %v1883
    %1948 = vst [vmem:[#allocation2 + $0x8] sm:$0xf] %v1884
    %1949 = vst [vmem:[#allocation2 + $0xc] sm:$0xf] %v1885
    %1950 = vst [vmem:[#allocation2 + $0x10] sm:$0xf] %v1886
    %1951 = vst [vmem:[#allocation2 + $0x14] sm:$0xf] %v1887
    %1952 = vst [vmem:[#allocation2 + $0x18] sm:$0xf] %v1888
    %1953 = vst [vmem:[#allocation2 + $0x1c] sm:$0xf] %v1889
    %1954 = vst [vmem:[#allocation2 + $0x20] sm:$0xf] %v1890
    %1955 = vst [vmem:[#allocation2 + $0x24] sm:$0xf] %v1891
    %1956 = vst [vmem:[#allocation2 + $0x28] sm:$0xf] %v1892
    %1957 = vst [vmem:[#allocation2 + $0x2c] sm:$0xf] %v1893
    %1958 = vst [vmem:[#allocation2 + $0x30] sm:$0xf] %v1894
    %1959 = vst [vmem:[#allocation2 + $0x34] sm:$0xf] %v1895
    %1960 = vst [vmem:[#allocation2 + $0x38] sm:$0xf] %v1896
    %1961 = vst [vmem:[#allocation2 + $0x3c] sm:$0xf] %v1897
    %1962 = vst [vmem:[#allocation2 + $0x40] sm:$0xf] %v1898
    %1963 = vst [vmem:[#allocation2 + $0x44] sm:$0xf] %v1899
    %1964 = vst [vmem:[#allocation2 + $0x48] sm:$0xf] %v1900
    %1965 = vst [vmem:[#allocation2 + $0x4c] sm:$0xf] %v1901
    %1966 = vst [vmem:[#allocation2 + $0x50] sm:$0xf] %v1902
    %1967 = vst [vmem:[#allocation2 + $0x54] sm:$0xf] %v1903
    %1968 = vst [vmem:[#allocation2 + $0x58] sm:$0xf] %v1904
    %1969 = vst [vmem:[#allocation2 + $0x5c] sm:$0xf] %v1905
    %1970 = vst [vmem:[#allocation2 + $0x60] sm:$0xf] %v1906
    %1971 = vst [vmem:[#allocation2 + $0x64] sm:$0xf] %v1907
    %1972 = vst [vmem:[#allocation2 + $0x68] sm:$0xf] %v1908
    %1973 = vst [vmem:[#allocation2 + $0x6c] sm:$0xf] %v1909
    %1974 = vst [vmem:[#allocation2 + $0x70] sm:$0xf] %v1910
    %1975 = vst [vmem:[#allocation2 + $0x74] sm:$0xf] %v1911
    %1976 = vst [vmem:[#allocation2 + $0x78] sm:$0xf] %v1912
    %1977 = vst [vmem:[#allocation2 + $0x7c] sm:$0xf] %v1913
    %1978 = vst [vmem:[#allocation2 + $0x80] sm:$0xf] %v1914
    %1979 = vst [vmem:[#allocation2 + $0x84] sm:$0xf] %v1915
    %1980 = vst [vmem:[#allocation2 + $0x88] sm:$0xf] %v1916
    %1981 = vst [vmem:[#allocation2 + $0x8c] sm:$0xf] %v1917
    %1982 = vst [vmem:[#allocation2 + $0x90] sm:$0xf] %v1918
    %1983 = vst [vmem:[#allocation2 + $0x94] sm:$0xf] %v1919
    %1984 = vst [vmem:[#allocation2 + $0x98] sm:$0xf] %v1920
    %1985 = vst [vmem:[#allocation2 + $0x9c] sm:$0xf] %v1921
    %1986 = vst [vmem:[#allocation2 + $0xa0] sm:$0xf] %v1922
    %1987 = vst [vmem:[#allocation2 + $0xa4] sm:$0xf] %v1923
    %1988 = vst [vmem:[#allocation2 + $0xa8] sm:$0xf] %v1924
    %1989 = vst [vmem:[#allocation2 + $0xac] sm:$0xf] %v1925
    %1990 = vst [vmem:[#allocation2 + $0xb0] sm:$0xf] %v1926
    %1991 = vst [vmem:[#allocation2 + $0xb4] sm:$0xf] %v1927
    %1992 = vst [vmem:[#allocation2 + $0xb8] sm:$0xf] %v1928
    %1993 = vst [vmem:[#allocation2 + $0xbc] sm:$0xf] %v1929
    %1994 = vst [vmem:[#allocation2 + $0xc0] sm:$0xf] %v1930
    %1995 = vst [vmem:[#allocation2 + $0xc4] sm:$0xf] %v1931
    %1996 = vst [vmem:[#allocation2 + $0xc8] sm:$0xf] %v1932
    %1997 = vst [vmem:[#allocation2 + $0xcc] sm:$0xf] %v1933
    %1998 = vst [vmem:[#allocation2 + $0xd0] sm:$0xf] %v1934
    %1999 = vst [vmem:[#allocation2 + $0xd4] sm:$0xf] %v1935
    %2000 = vst [vmem:[#allocation2 + $0xd8] sm:$0xf] %v1936
    %2001 = vst [vmem:[#allocation2 + $0xdc] sm:$0xf] %v1937
    %2002 = vst [vmem:[#allocation2 + $0xe0] sm:$0xf] %v1938
    %2003 = vst [vmem:[#allocation2 + $0xe4] sm:$0xf] %v1939
    %2004 = vst [vmem:[#allocation2 + $0xe8] sm:$0xf] %v1940
    %2005 = vst [vmem:[#allocation2 + $0xec] sm:$0xf] %v1941
    %2006 = vst [vmem:[#allocation2 + $0xf0] sm:$0xf] %v1942
    %2007 = vst [vmem:[#allocation2 + $0xf4] sm:$0xf] %v1943
    %2008 = vst [vmem:[#allocation2 + $0xf8] sm:$0xf] %v1944
    %2009 = vst [vmem:[#allocation2 + $0xfc] sm:$0xf] %v1945
    // Predicated region
    $region46: #{tpu_custom_call.1} parent=1 // pred_check
      _
    $region47: #{tpu_custom_call.1} parent=1 // pred_check_branch
      %2011 = sbr.rel (0) target = $region49
    $region48: #{tpu_custom_call.1} parent=1 // pred_region
      %2013 = vsyncadd [#allocation3], 0
      %s2014 = sshll.u32 [#allocation2], 4
      %s2015 = int_to_ptr.vmem [resolvable:$true] %s2014
      %s2016 = sshll.u32 %s11, 4
      %s2017 = int_to_ptr.hbm [resolvable:$true] %s2016
      %2022 = dma.vmem_to_hbm [thread:$0]  %s2015, 4096, %s2017, [#allocation3], 64, 64, 4
    $region49: #{tpu_custom_call.1} parent=1 // pred_fallthru
      _
    // Predicated region
    $region50: #{tpu_custom_call.1} parent=1 // pred_check
      _
    $region51: #{tpu_custom_call.1} parent=1 // pred_check_branch
      %2024 = sbr.rel (0) target = $region53
    $region52: #{tpu_custom_call.1} parent=1 // pred_region
      %2026 = dma.done [#allocation3], 4096
    $region53: #{tpu_custom_call.1} parent=1 // pred_fallthru
      _
    %2027 = vsyncpa [#allocation3], 1

</llo_original>
